<compile_context>
chip_gen: v6e
topology: v6e:2x2x1
jax: 0.10.0
libtpu: 0.0.40
codegen_flags: <defaults>
</compile_context>

<pallas_src>
import functools

import jax
import jax.numpy as jnp
from jax.experimental import pallas as pl
from jax.experimental.pallas import tpu as pltpu

HIDDEN = 128  # fixed hidden width of the PyTorch Adversary


def _adversary_kernel(x_ref, z_ref, pad_ref,
                      wxi_ref, wzi_ref, bi_ref,
                      wd0_ref, bd0_ref, wn0_ref, bn0_ref,
                      wd1_ref, bd1_ref, wn1_ref, bn1_ref,
                      wo_ref, bo_ref,
                      out_ref):
    x = x_ref[...]            # (TM, E)
    z = z_ref[...]            # (TM, L)

    # linear_i(cat(x, z)) == x @ Wi[:E] + z @ Wi[E:] + b
    net = (jnp.dot(x, wxi_ref[...], preferred_element_type=jnp.float32)
           + jnp.dot(z, wzi_ref[...], preferred_element_type=jnp.float32)
           + bi_ref[...])
    # dropout1: identity in inference mode.
    # TODO(synk): training-mode dropout (p=0.2) would need pltpu.prng_*; the
    # eval-mode forward treats both dropouts as identity.

    for wd_ref, bd_ref, wn_ref, bn_ref in (
        (wd0_ref, bd0_ref, wn0_ref, bn0_ref),
        (wd1_ref, bd1_ref, wn1_ref, bn1_ref),
    ):
        dnet = (jnp.dot(net, wd_ref[...], preferred_element_type=jnp.float32)
                + bd_ref[...])
        net = net + (jnp.dot(dnet, wn_ref[...],
                             preferred_element_type=jnp.float32)
                     + bn_ref[...])
        # ELU (alpha=1): x if x > 0 else exp(x) - 1  (exp runs on the EUP slot).
        neg = jnp.exp(jnp.minimum(net, 0.0)) - 1.0
        net = jnp.where(net > 0.0, net, neg)

    out = (jnp.dot(net, wo_ref[...], preferred_element_type=jnp.float32)
           + bo_ref[...])
    # dropout2: identity in inference mode.
    out = out + 0.5 * z * z
    out = out * (1.0 - pad_ref[...])          # (TM, 1) mask broadcast over lanes
    out_ref[...] = out


def init_adversary_params(hyper_params, key):
    e = hyper_params["item_embed_size"]
    l = hyper_params["latent_size"]
    h = HIDDEN

    def linear(k, fan_in, fan_out):
        kw, kb = jax.random.split(k)
        bound = 1.0 / (fan_in ** 0.5)          # nn.Linear default init
        w = jax.random.uniform(kw, (fan_in, fan_out), jnp.float32, -bound, bound)
        b = jax.random.uniform(kb, (1, fan_out), jnp.float32, -bound, bound)
        return w, b

    keys = jax.random.split(key, 6)
    wi, bi = linear(keys[0], e + l, h)
    wd0, bd0 = linear(keys[1], h, h)
    wn0, bn0 = linear(keys[2], h, h)
    wd1, bd1 = linear(keys[3], h, h)
    wn1, bn1 = linear(keys[4], h, h)
    wo, bo = linear(keys[5], h, l)

    return dict(
        wxi=wi[:e], wzi=wi[e:], bi=bi,
        wd0=wd0, bd0=bd0, wn0=wn0, bn0=bn0,
        wd1=wd1, bd1=bd1, wn1=wn1, bn1=bn1,
        wo=wo, bo=bo,
    )


_WEIGHT_ORDER = ("wxi", "wzi", "bi",
                 "wd0", "bd0", "wn0", "bn0",
                 "wd1", "bd1", "wn1", "bn1",
                 "wo", "bo")


@functools.partial(jax.jit, static_argnames=("block_tokens",))
def adversary_forward(params, x, z, padding, *, block_tokens=128):
    """JAX/Pallas equivalent of Adversary.forward (inference mode)."""
    b, t, e = x.shape
    l = z.shape[-1]
    n = b * t

    xf = x.reshape(n, e).astype(jnp.float32)
    zf = z.reshape(n, l).astype(jnp.float32)
    pf = padding.reshape(n, 1).astype(jnp.float32)

    tm = block_tokens
    n_pad = pl.cdiv(n, tm) * tm
    if n_pad != n:
        pad_amt = n_pad - n
        xf = jnp.pad(xf, ((0, pad_amt), (0, 0)))
        zf = jnp.pad(zf, ((0, pad_amt), (0, 0)))
        pf = jnp.pad(pf, ((0, pad_amt), (0, 0)))

    def tok_spec(d):
        return pl.BlockSpec((tm, d), lambda i: (i, 0))

    def full_spec(arr):
        # Weights: full-array block, constant index -> stays resident in VMEM.
        return pl.BlockSpec(arr.shape, lambda i: (0, 0))

    weights = [params[k] for k in _WEIGHT_ORDER]

    out_flat = pl.pallas_call(
        _adversary_kernel,
        out_shape=jax.ShapeDtypeStruct((n_pad, l), jnp.float32),
        grid=(n_pad // tm,),
        in_specs=[tok_spec(e), tok_spec(l), tok_spec(1)]
                + [full_spec(w) for w in weights],
        out_specs=tok_spec(l),
        compiler_params=pltpu.CompilerParams(
            dimension_semantics=("parallel",),   # independent token blocks
        ),
    )(xf, zf, pf, *weights)

    return out_flat[:n].reshape(b, t, l)


def adversary_ref(params, x, z, padding):
    """Pure-JAX reference mirroring Adversary.forward (inference mode)."""
    net = x @ params["wxi"] + z @ params["wzi"] + params["bi"]
    for i in range(2):
        dnet = net @ params[f"wd{i}"] + params[f"bd{i}"]
        net = net + dnet @ params[f"wn{i}"] + params[f"bn{i}"]
        net = jnp.where(net > 0.0, net, jnp.exp(jnp.minimum(net, 0.0)) - 1.0)
    out = net @ params["wo"] + params["bo"]
    out = out + 0.5 * jnp.square(z)
    out = out * (1.0 - padding.astype(jnp.float32)[..., None])
    return out


if __name__ == "__main__":
    hyper_params = {"item_embed_size": 32, "latent_size": 32}
    B, T = 2, 8

    key = jax.random.PRNGKey(0)
    k_params, k_x, k_z, k_pad = jax.random.split(key, 4)

    params = init_adversary_params(hyper_params, k_params)

    x = jax.random.normal(k_x, (B, T, hyper_params["item_embed_size"]), jnp.float32)
    z = jax.random.normal(k_z, (B, T, hyper_params["latent_size"]), jnp.float32)
    padding = jax.random.bernoulli(k_pad, 0.3, (B, T))   # True = padded position

    out = adversary_forward(params, x, z, padding)
    out = jax.block_until_ready(out)

    ref = adversary_ref(params, x, z, padding)
    assert out.shape == (B, T, hyper_params["latent_size"])
    assert jnp.allclose(out, ref, rtol=5e-3, atol=5e-3), (
        f"Pallas Adversary mismatch vs reference; "
        f"max abs diff = {float(jnp.max(jnp.abs(out - ref)))}"
    )

    print("KERNEL_OK")
</pallas_src>

<mosaic_0001>
module attributes {stable_mosaic.version = 11 : i64} {
  func.func @_adversary_kernel(%arg0: i32, %arg1: memref<128x32xf32, #tpu.memory_space<vmem>>, %arg2: memref<128x32xf32, #tpu.memory_space<vmem>>, %arg3: memref<128x1xf32, #tpu.memory_space<vmem>>, %arg4: memref<32x128xf32, #tpu.memory_space<vmem>>, %arg5: memref<32x128xf32, #tpu.memory_space<vmem>>, %arg6: memref<1x128xf32, #tpu.memory_space<vmem>>, %arg7: memref<128x128xf32, #tpu.memory_space<vmem>>, %arg8: memref<1x128xf32, #tpu.memory_space<vmem>>, %arg9: memref<128x128xf32, #tpu.memory_space<vmem>>, %arg10: memref<1x128xf32, #tpu.memory_space<vmem>>, %arg11: memref<128x128xf32, #tpu.memory_space<vmem>>, %arg12: memref<1x128xf32, #tpu.memory_space<vmem>>, %arg13: memref<128x128xf32, #tpu.memory_space<vmem>>, %arg14: memref<1x128xf32, #tpu.memory_space<vmem>>, %arg15: memref<128x32xf32, #tpu.memory_space<vmem>>, %arg16: memref<1x32xf32, #tpu.memory_space<vmem>>, %arg17: memref<128x32xf32, #tpu.memory_space<vmem>>) attributes {dimension_semantics = [#tpu.dimension_semantics<parallel>], iteration_bounds = array<i64: 1>, scalar_prefetch = 0 : i64, scratch_operands = 0 : i64, tpu.core_type = #tpu.core_type<tc>, window_params = [{transform_indices = @transform_0, window_bounds = array<i64: 128, 32>}, {transform_indices = @transform_1, window_bounds = array<i64: 128, 32>}, {transform_indices = @transform_2, window_bounds = array<i64: 128, 1>}, {pipeline_mode = #tpu.pipeline_mode<synchronous>, transform_indices = @transform_3, window_bounds = array<i64: 32, 128>}, {pipeline_mode = #tpu.pipeline_mode<synchronous>, transform_indices = @transform_4, window_bounds = array<i64: 32, 128>}, {pipeline_mode = #tpu.pipeline_mode<synchronous>, transform_indices = @transform_5, window_bounds = array<i64: 1, 128>}, {pipeline_mode = #tpu.pipeline_mode<synchronous>, transform_indices = @transform_6, window_bounds = array<i64: 128, 128>}, {pipeline_mode = #tpu.pipeline_mode<synchronous>, transform_indices = @transform_7, window_bounds = array<i64: 1, 128>}, {pipeline_mode = #tpu.pipeline_mode<synchronous>, transform_indices = @transform_8, window_bounds = array<i64: 128, 128>}, {pipeline_mode = #tpu.pipeline_mode<synchronous>, transform_indices = @transform_9, window_bounds = array<i64: 1, 128>}, {pipeline_mode = #tpu.pipeline_mode<synchronous>, transform_indices = @transform_10, window_bounds = array<i64: 128, 128>}, {pipeline_mode = #tpu.pipeline_mode<synchronous>, transform_indices = @transform_11, window_bounds = array<i64: 1, 128>}, {pipeline_mode = #tpu.pipeline_mode<synchronous>, transform_indices = @transform_12, window_bounds = array<i64: 128, 128>}, {pipeline_mode = #tpu.pipeline_mode<synchronous>, transform_indices = @transform_13, window_bounds = array<i64: 1, 128>}, {pipeline_mode = #tpu.pipeline_mode<synchronous>, transform_indices = @transform_14, window_bounds = array<i64: 128, 32>}, {pipeline_mode = #tpu.pipeline_mode<synchronous>, transform_indices = @transform_15, window_bounds = array<i64: 1, 32>}, {transform_indices = @transform_16, window_bounds = array<i64: 128, 32>}]} {
    %c0 = arith.constant 0 : index
    %c0_0 = arith.constant 0 : index
    %0 = vector.load %arg1[%c0, %c0_0] : memref<128x32xf32, #tpu.memory_space<vmem>>, vector<128x32xf32>
    %c0_1 = arith.constant 0 : index
    %c0_2 = arith.constant 0 : index
    %1 = vector.load %arg2[%c0_1, %c0_2] : memref<128x32xf32, #tpu.memory_space<vmem>>, vector<128x32xf32>
    %c0_3 = arith.constant 0 : index
    %c0_4 = arith.constant 0 : index
    %2 = vector.load %arg4[%c0_3, %c0_4] : memref<32x128xf32, #tpu.memory_space<vmem>>, vector<32x128xf32>
    %cst = arith.constant dense<0.000000e+00> : vector<128x128xf32>
    %3 = tpu.matmul %0, %2, %cst {dimension_numbers = #tpu.dot_dimension_numbers<[1], [0], [0], [1], [0, 0, 1, 1], [], []>} : vector<128x32xf32>, vector<32x128xf32>, vector<128x128xf32> -> vector<128x128xf32>
    %c0_5 = arith.constant 0 : index
    %c0_6 = arith.constant 0 : index
    %4 = vector.load %arg5[%c0_5, %c0_6] : memref<32x128xf32, #tpu.memory_space<vmem>>, vector<32x128xf32>
    %cst_7 = arith.constant dense<0.000000e+00> : vector<128x128xf32>
    %5 = tpu.matmul %1, %4, %cst_7 {dimension_numbers = #tpu.dot_dimension_numbers<[1], [0], [0], [1], [0, 0, 1, 1], [], []>} : vector<128x32xf32>, vector<32x128xf32>, vector<128x128xf32> -> vector<128x128xf32>
    %6 = arith.addf %3, %5 : vector<128x128xf32>
    %c0_8 = arith.constant 0 : index
    %c0_9 = arith.constant 0 : index
    %7 = vector.load %arg6[%c0_8, %c0_9] : memref<1x128xf32, #tpu.memory_space<vmem>>, vector<1x128xf32>
    %8 = vector.broadcast %7 : vector<1x128xf32> to vector<128x128xf32>
    %9 = arith.addf %6, %8 : vector<128x128xf32>
    %c0_10 = arith.constant 0 : index
    %c0_11 = arith.constant 0 : index
    %10 = vector.load %arg7[%c0_10, %c0_11] : memref<128x128xf32, #tpu.memory_space<vmem>>, vector<128x128xf32>
    %cst_12 = arith.constant dense<0.000000e+00> : vector<128x128xf32>
    %11 = tpu.matmul %9, %10, %cst_12 {dimension_numbers = #tpu.dot_dimension_numbers<[1], [0], [0], [1], [0, 0, 1, 1], [], []>} : vector<128x128xf32>, vector<128x128xf32>, vector<128x128xf32> -> vector<128x128xf32>
    %c0_13 = arith.constant 0 : index
    %c0_14 = arith.constant 0 : index
    %12 = vector.load %arg8[%c0_13, %c0_14] : memref<1x128xf32, #tpu.memory_space<vmem>>, vector<1x128xf32>
    %13 = vector.broadcast %12 : vector<1x128xf32> to vector<128x128xf32>
    %14 = arith.addf %11, %13 : vector<128x128xf32>
    %c0_15 = arith.constant 0 : index
    %c0_16 = arith.constant 0 : index
    %15 = vector.load %arg9[%c0_15, %c0_16] : memref<128x128xf32, #tpu.memory_space<vmem>>, vector<128x128xf32>
    %cst_17 = arith.constant dense<0.000000e+00> : vector<128x128xf32>
    %16 = tpu.matmul %14, %15, %cst_17 {dimension_numbers = #tpu.dot_dimension_numbers<[1], [0], [0], [1], [0, 0, 1, 1], [], []>} : vector<128x128xf32>, vector<128x128xf32>, vector<128x128xf32> -> vector<128x128xf32>
    %c0_18 = arith.constant 0 : index
    %c0_19 = arith.constant 0 : index
    %17 = vector.load %arg10[%c0_18, %c0_19] : memref<1x128xf32, #tpu.memory_space<vmem>>, vector<1x128xf32>
    %18 = vector.broadcast %17 : vector<1x128xf32> to vector<128x128xf32>
    %19 = arith.addf %16, %18 : vector<128x128xf32>
    %20 = arith.addf %9, %19 : vector<128x128xf32>
    %cst_20 = arith.constant 0.000000e+00 : f32
    %21 = vector.broadcast %cst_20 : f32 to vector<128x128xf32>
    %22 = arith.minimumf %20, %21 : vector<128x128xf32>
    %23 = math.exp %22 : vector<128x128xf32>
    %cst_21 = arith.constant 1.000000e+00 : f32
    %24 = vector.broadcast %cst_21 : f32 to vector<128x128xf32>
    %25 = arith.subf %23, %24 : vector<128x128xf32>
    %cst_22 = arith.constant 0.000000e+00 : f32
    %26 = vector.broadcast %cst_22 : f32 to vector<128x128xf32>
    %27 = arith.cmpf ogt, %20, %26 : vector<128x128xf32>
    %28 = arith.select %27, %20, %25 : vector<128x128xi1>, vector<128x128xf32>
    %c0_23 = arith.constant 0 : index
    %c0_24 = arith.constant 0 : index
    %29 = vector.load %arg11[%c0_23, %c0_24] : memref<128x128xf32, #tpu.memory_space<vmem>>, vector<128x128xf32>
    %cst_25 = arith.constant dense<0.000000e+00> : vector<128x128xf32>
    %30 = tpu.matmul %28, %29, %cst_25 {dimension_numbers = #tpu.dot_dimension_numbers<[1], [0], [0], [1], [0, 0, 1, 1], [], []>} : vector<128x128xf32>, vector<128x128xf32>, vector<128x128xf32> -> vector<128x128xf32>
    %c0_26 = arith.constant 0 : index
    %c0_27 = arith.constant 0 : index
    %31 = vector.load %arg12[%c0_26, %c0_27] : memref<1x128xf32, #tpu.memory_space<vmem>>, vector<1x128xf32>
    %32 = vector.broadcast %31 : vector<1x128xf32> to vector<128x128xf32>
    %33 = arith.addf %30, %32 : vector<128x128xf32>
    %c0_28 = arith.constant 0 : index
    %c0_29 = arith.constant 0 : index
    %34 = vector.load %arg13[%c0_28, %c0_29] : memref<128x128xf32, #tpu.memory_space<vmem>>, vector<128x128xf32>
    %cst_30 = arith.constant dense<0.000000e+00> : vector<128x128xf32>
    %35 = tpu.matmul %33, %34, %cst_30 {dimension_numbers = #tpu.dot_dimension_numbers<[1], [0], [0], [1], [0, 0, 1, 1], [], []>} : vector<128x128xf32>, vector<128x128xf32>, vector<128x128xf32> -> vector<128x128xf32>
    %c0_31 = arith.constant 0 : index
    %c0_32 = arith.constant 0 : index
    %36 = vector.load %arg14[%c0_31, %c0_32] : memref<1x128xf32, #tpu.memory_space<vmem>>, vector<1x128xf32>
    %37 = vector.broadcast %36 : vector<1x128xf32> to vector<128x128xf32>
    %38 = arith.addf %35, %37 : vector<128x128xf32>
    %39 = arith.addf %28, %38 : vector<128x128xf32>
    %cst_33 = arith.constant 0.000000e+00 : f32
    %40 = vector.broadcast %cst_33 : f32 to vector<128x128xf32>
    %41 = arith.minimumf %39, %40 : vector<128x128xf32>
    %42 = math.exp %41 : vector<128x128xf32>
    %cst_34 = arith.constant 1.000000e+00 : f32
    %43 = vector.broadcast %cst_34 : f32 to vector<128x128xf32>
    %44 = arith.subf %42, %43 : vector<128x128xf32>
    %cst_35 = arith.constant 0.000000e+00 : f32
    %45 = vector.broadcast %cst_35 : f32 to vector<128x128xf32>
    %46 = arith.cmpf ogt, %39, %45 : vector<128x128xf32>
    %47 = arith.select %46, %39, %44 : vector<128x128xi1>, vector<128x128xf32>
    %c0_36 = arith.constant 0 : index
    %c0_37 = arith.constant 0 : index
    %48 = vector.load %arg15[%c0_36, %c0_37] : memref<128x32xf32, #tpu.memory_space<vmem>>, vector<128x32xf32>
    %cst_38 = arith.constant dense<0.000000e+00> : vector<128x32xf32>
    %49 = tpu.matmul %47, %48, %cst_38 {dimension_numbers = #tpu.dot_dimension_numbers<[1], [0], [0], [1], [0, 0, 1, 1], [], []>} : vector<128x128xf32>, vector<128x32xf32>, vector<128x32xf32> -> vector<128x32xf32>
    %c0_39 = arith.constant 0 : index
    %c0_40 = arith.constant 0 : index
    %50 = vector.load %arg16[%c0_39, %c0_40] : memref<1x32xf32, #tpu.memory_space<vmem>>, vector<1x32xf32>
    %51 = vector.broadcast %50 : vector<1x32xf32> to vector<128x32xf32>
    %52 = arith.addf %49, %51 : vector<128x32xf32>
    %cst_41 = arith.constant 5.000000e-01 : f32
    %53 = vector.broadcast %cst_41 : f32 to vector<128x32xf32>
    %54 = arith.mulf %53, %1 : vector<128x32xf32>
    %55 = arith.mulf %54, %1 : vector<128x32xf32>
    %56 = arith.addf %52, %55 : vector<128x32xf32>
    %c0_42 = arith.constant 0 : index
    %c0_43 = arith.constant 0 : index
    %57 = vector.load %arg3[%c0_42, %c0_43] : memref<128x1xf32, #tpu.memory_space<vmem>>, vector<128x1xf32>
    %cst_44 = arith.constant 1.000000e+00 : f32
    %58 = vector.broadcast %cst_44 : f32 to vector<128x1xf32>
    %59 = arith.subf %58, %57 : vector<128x1xf32>
    %60 = vector.broadcast %59 : vector<128x1xf32> to vector<128x32xf32>
    %61 = arith.mulf %56, %60 : vector<128x32xf32>
    %c0_45 = arith.constant 0 : index
    %c0_46 = arith.constant 0 : index
    %62 = vector.load %arg17[%c0_45, %c0_46] : memref<128x32xf32, #tpu.memory_space<vmem>>, vector<128x32xf32>
    tpu.vector_store %arg17[%c0_45, %c0_46], %61 {strides = array<i32>} : memref<128x32xf32, #tpu.memory_space<vmem>>, vector<128x32xf32>,
    return
  }
  func.func @transform_0(%arg0: i32) -> (i32, i32) {
    %c0_i32 = arith.constant 0 : i32
    %c0_i32_0 = arith.constant 0 : i32
    return %arg0, %c0_i32 : i32, i32
  }
  func.func @transform_1(%arg0: i32) -> (i32, i32) {
    %c0_i32 = arith.constant 0 : i32
    %c0_i32_0 = arith.constant 0 : i32
    return %arg0, %c0_i32 : i32, i32
  }
  func.func @transform_2(%arg0: i32) -> (i32, i32) {
    %c0_i32 = arith.constant 0 : i32
    %c0_i32_0 = arith.constant 0 : i32
    return %arg0, %c0_i32 : i32, i32
  }
  func.func @transform_3(%arg0: i32) -> (i32, i32) {
    %c0_i32 = arith.constant 0 : i32
    %c0_i32_0 = arith.constant 0 : i32
    %c0_i32_1 = arith.constant 0 : i32
    return %c0_i32, %c0_i32_0 : i32, i32
  }
  func.func @transform_4(%arg0: i32) -> (i32, i32) {
    %c0_i32 = arith.constant 0 : i32
    %c0_i32_0 = arith.constant 0 : i32
    %c0_i32_1 = arith.constant 0 : i32
    return %c0_i32, %c0_i32_0 : i32, i32
  }
  func.func @transform_5(%arg0: i32) -> (i32, i32) {
    %c0_i32 = arith.constant 0 : i32
    %c0_i32_0 = arith.constant 0 : i32
    %c0_i32_1 = arith.constant 0 : i32
    return %c0_i32, %c0_i32_0 : i32, i32
  }
  func.func @transform_6(%arg0: i32) -> (i32, i32) {
    %c0_i32 = arith.constant 0 : i32
    %c0_i32_0 = arith.constant 0 : i32
    %c0_i32_1 = arith.constant 0 : i32
    return %c0_i32, %c0_i32_0 : i32, i32
  }
  func.func @transform_7(%arg0: i32) -> (i32, i32) {
    %c0_i32 = arith.constant 0 : i32
    %c0_i32_0 = arith.constant 0 : i32
    %c0_i32_1 = arith.constant 0 : i32
    return %c0_i32, %c0_i32_0 : i32, i32
  }
  func.func @transform_8(%arg0: i32) -> (i32, i32) {
    %c0_i32 = arith.constant 0 : i32
    %c0_i32_0 = arith.constant 0 : i32
    %c0_i32_1 = arith.constant 0 : i32
    return %c0_i32, %c0_i32_0 : i32, i32
  }
  func.func @transform_9(%arg0: i32) -> (i32, i32) {
    %c0_i32 = arith.constant 0 : i32
    %c0_i32_0 = arith.constant 0 : i32
    %c0_i32_1 = arith.constant 0 : i32
    return %c0_i32, %c0_i32_0 : i32, i32
  }
  func.func @transform_10(%arg0: i32) -> (i32, i32) {
    %c0_i32 = arith.constant 0 : i32
    %c0_i32_0 = arith.constant 0 : i32
    %c0_i32_1 = arith.constant 0 : i32
    return %c0_i32, %c0_i32_0 : i32, i32
  }
  func.func @transform_11(%arg0: i32) -> (i32, i32) {
    %c0_i32 = arith.constant 0 : i32
    %c0_i32_0 = arith.constant 0 : i32
    %c0_i32_1 = arith.constant 0 : i32
    return %c0_i32, %c0_i32_0 : i32, i32
  }
  func.func @transform_12(%arg0: i32) -> (i32, i32) {
    %c0_i32 = arith.constant 0 : i32
    %c0_i32_0 = arith.constant 0 : i32
    %c0_i32_1 = arith.constant 0 : i32
    return %c0_i32, %c0_i32_0 : i32, i32
  }
  func.func @transform_13(%arg0: i32) -> (i32, i32) {
    %c0_i32 = arith.constant 0 : i32
    %c0_i32_0 = arith.constant 0 : i32
    %c0_i32_1 = arith.constant 0 : i32
    return %c0_i32, %c0_i32_0 : i32, i32
  }
  func.func @transform_14(%arg0: i32) -> (i32, i32) {
    %c0_i32 = arith.constant 0 : i32
    %c0_i32_0 = arith.constant 0 : i32
    %c0_i32_1 = arith.constant 0 : i32
    return %c0_i32, %c0_i32_0 : i32, i32
  }
  func.func @transform_15(%arg0: i32) -> (i32, i32) {
    %c0_i32 = arith.constant 0 : i32
    %c0_i32_0 = arith.constant 0 : i32
    %c0_i32_1 = arith.constant 0 : i32
    return %c0_i32, %c0_i32_0 : i32, i32
  }
  func.func @transform_16(%arg0: i32) -> (i32, i32) {
    %c0_i32 = arith.constant 0 : i32
    %c0_i32_0 = arith.constant 0 : i32
    return %arg0, %c0_i32 : i32, i32
  }
}

</mosaic_0001>

<llo_original>
// kernel: adversary_forward.1
$region0: #{adversary_forward.1}
  #allocation0 [shape = 'u32[]', space=smem, size = 0x4, offset = 0x4, fixed_abs, tag = 'smem constant byte address 0x4 - core index']
  #allocation1 [shape = 'u32[144,128]{1,0:T(1,128)}', space=vmem, size = 0x12000, scoped, tag = 'internal scratch']
  %s0 = inlined_call_operand.vmem [shape: f32[128,32], index: 0, kind: input, shape index: {}]
  %s1 = inlined_call_operand.vmem [shape: f32[128,32], index: 1, kind: input, shape index: {}]
  %s2 = inlined_call_operand.vmem [shape: f32[128,1], index: 2, kind: input, shape index: {}]
  %s3 = inlined_call_operand.vmem [shape: f32[32,128], index: 3, kind: input, shape index: {}]
  %s4 = inlined_call_operand.vmem [shape: f32[32,128], index: 4, kind: input, shape index: {}]
  %s5 = inlined_call_operand.vmem [shape: f32[1,128], index: 5, kind: input, shape index: {}]
  %s6 = inlined_call_operand.vmem [shape: f32[128,128], index: 6, kind: input, shape index: {}]
  %s7 = inlined_call_operand.vmem [shape: f32[1,128], index: 7, kind: input, shape index: {}]
  %s8 = inlined_call_operand.vmem [shape: f32[128,128], index: 8, kind: input, shape index: {}]
  %s9 = inlined_call_operand.hbm [shape: f32[1,128], index: 9, kind: input, shape index: {}]
  %s10 = inlined_call_operand.vmem [shape: f32[128,128], index: 10, kind: input, shape index: {}]
  %s11 = inlined_call_operand.hbm [shape: f32[1,128], index: 11, kind: input, shape index: {}]
  %s12 = inlined_call_operand.vmem [shape: f32[128,128], index: 12, kind: input, shape index: {}]
  %s13 = inlined_call_operand.hbm [shape: f32[1,128], index: 13, kind: input, shape index: {}]
  %s14 = inlined_call_operand.vmem [shape: f32[128,32], index: 14, kind: input, shape index: {}]
  %s15 = inlined_call_operand.hbm [shape: f32[1,32], index: 15, kind: input, shape index: {}]
  %s16 = inlined_call_operand.vmem [shape: f32[128,32], index: 16, kind: output, shape index: {}]
  %s17 = sld [smem:[#allocation0]]
  $region90: #{adversary_forward.1} parent=0
    _
  %s19 = ssub.s32 1, %s17
  %s20 = scalar_select 0, %s19, %s17
  $region1: #{adversary_forward.1} parent=0
    #allocation2 [shape = 'u8[512]{0}', space=vmem, size = 0x400, scoped, tag = 'input window, operand 9, single buffered']
    #allocation3 [shape = 's32[1]{0}', space=sflag, size = 0x4, scoped, tag = 'scoped memory for adversary_forward.1']
    #allocation4 [shape = 'u8[512]{0}', space=vmem, size = 0x400, scoped, tag = 'input window, operand 11, single buffered']
    #allocation5 [shape = 's32[1]{0}', space=sflag, size = 0x4, scoped, tag = 'scoped memory for adversary_forward.1']
    #allocation6 [shape = 'u8[512]{0}', space=vmem, size = 0x400, scoped, tag = 'input window, operand 13, single buffered']
    #allocation7 [shape = 'u8[512]{0}', space=vmem, size = 0x400, scoped, tag = 'input window, operand 15, single buffered']
    #allocation8 [shape = 's32[1]{0}', space=sflag, size = 0x4, scoped, tag = 'scoped memory for adversary_forward.1']
    %21 = vsyncpa [#allocation3], 0
    %22 = vsyncpa [#allocation5], 0
    %23 = vsyncpa [#allocation8], 0
    // Predicated region
    $region2: #{adversary_forward.1} parent=1 // pred_check
      _
    $region3: #{adversary_forward.1} parent=1 // pred_check_branch
      %25 = sbr.rel (0) target = $region5
    $region4: #{adversary_forward.1} parent=1 // pred_region
      _
    $region5: #{adversary_forward.1} parent=1 // pred_fallthru
      _
    // Predicated region
    $region6: #{adversary_forward.1} parent=1 // pred_check
      _
    $region7: #{adversary_forward.1} parent=1 // pred_check_branch
      %27 = sbr.rel (0) target = $region9
    $region8: #{adversary_forward.1} parent=1 // pred_region
      _
    $region9: #{adversary_forward.1} parent=1 // pred_fallthru
      _
    // Predicated region
    $region10: #{adversary_forward.1} parent=1 // pred_check
      _
    $region11: #{adversary_forward.1} parent=1 // pred_check_branch
      %29 = sbr.rel (0) target = $region13
    $region12: #{adversary_forward.1} parent=1 // pred_region
      _
    $region13: #{adversary_forward.1} parent=1 // pred_fallthru
      _
    // Predicated region
    $region14: #{adversary_forward.1} parent=1 // pred_check
      _
    $region15: #{adversary_forward.1} parent=1 // pred_check_branch
      %31 = sbr.rel (0) target = $region17
    $region16: #{adversary_forward.1} parent=1 // pred_region
      _
    $region17: #{adversary_forward.1} parent=1 // pred_fallthru
      _
    // Predicated region
    $region18: #{adversary_forward.1} parent=1 // pred_check
      _
    $region19: #{adversary_forward.1} parent=1 // pred_check_branch
      %33 = sbr.rel (0) target = $region21
    $region20: #{adversary_forward.1} parent=1 // pred_region
      _
    $region21: #{adversary_forward.1} parent=1 // pred_fallthru
      _
    // Predicated region
    $region22: #{adversary_forward.1} parent=1 // pred_check
      _
    $region23: #{adversary_forward.1} parent=1 // pred_check_branch
      %35 = sbr.rel (0) target = $region25
    $region24: #{adversary_forward.1} parent=1 // pred_region
      _
    $region25: #{adversary_forward.1} parent=1 // pred_fallthru
      _
    // Predicated region
    $region26: #{adversary_forward.1} parent=1 // pred_check
      _
    $region27: #{adversary_forward.1} parent=1 // pred_check_branch
      %37 = sbr.rel (0) target = $region29
    $region28: #{adversary_forward.1} parent=1 // pred_region
      _
    $region29: #{adversary_forward.1} parent=1 // pred_fallthru
      _
    // Predicated region
    $region30: #{adversary_forward.1} parent=1 // pred_check
      _
    $region31: #{adversary_forward.1} parent=1 // pred_check_branch
      %39 = sbr.rel (0) target = $region33
    $region32: #{adversary_forward.1} parent=1 // pred_region
      _
    $region33: #{adversary_forward.1} parent=1 // pred_fallthru
      _
    // Predicated region
    $region34: #{adversary_forward.1} parent=1 // pred_check
      _
    $region35: #{adversary_forward.1} parent=1 // pred_check_branch
      %41 = sbr.rel (0) target = $region37
    $region36: #{adversary_forward.1} parent=1 // pred_region
      _
    $region37: #{adversary_forward.1} parent=1 // pred_fallthru
      _
    // Predicated region
    $region38: #{adversary_forward.1} parent=1 // pred_check
      _
    $region39: #{adversary_forward.1} parent=1 // pred_check_branch
      %43 = sbr.rel (0) target = $region41
    $region40: #{adversary_forward.1} parent=1 // pred_region
      %s45 = ssub.s32 16, 16
      %46 = vsyncadd [#allocation3], %s45
      %s48 = sshll.u32 [#allocation2], 4
      %s49 = int_to_ptr.vmem [resolvable:$true] %s48
      %51 = dma.hbm_to_vmem [thread:$0]  %s9, 16, %s49, [#allocation3]
    $region41: #{adversary_forward.1} parent=1 // pred_fallthru
      _
    // Predicated region
    $region42: #{adversary_forward.1} parent=1 // pred_check
      _
    $region43: #{adversary_forward.1} parent=1 // pred_check_branch
      %53 = sbr.rel (0) target = $region45
    $region44: #{adversary_forward.1} parent=1 // pred_region
      _
    $region45: #{adversary_forward.1} parent=1 // pred_fallthru
      _
    // Predicated region
    $region46: #{adversary_forward.1} parent=1 // pred_check
      _
    $region47: #{adversary_forward.1} parent=1 // pred_check_branch
      %55 = sbr.rel (0) target = $region49
    $region48: #{adversary_forward.1} parent=1 // pred_region
      %s57 = ssub.s32 16, 16
      %58 = vsyncadd [#allocation5], %s57
      %s60 = sshll.u32 [#allocation4], 4
      %s61 = int_to_ptr.vmem [resolvable:$true] %s60
      %63 = dma.hbm_to_vmem [thread:$0]  %s11, 16, %s61, [#allocation5]
    $region49: #{adversary_forward.1} parent=1 // pred_fallthru
      _
    // Predicated region
    $region50: #{adversary_forward.1} parent=1 // pred_check
      _
    $region51: #{adversary_forward.1} parent=1 // pred_check_branch
      %65 = sbr.rel (0) target = $region53
    $region52: #{adversary_forward.1} parent=1 // pred_region
      _
    $region53: #{adversary_forward.1} parent=1 // pred_fallthru
      _
    // Predicated region
    $region54: #{adversary_forward.1} parent=1 // pred_check
      _
    $region55: #{adversary_forward.1} parent=1 // pred_check_branch
      %67 = sbr.rel (0) target = $region57
    $region56: #{adversary_forward.1} parent=1 // pred_region
      %s69 = ssub.s32 16, 16
      %70 = vsyncadd [#allocation5], %s69
      %s72 = sshll.u32 [#allocation6], 4
      %s73 = int_to_ptr.vmem [resolvable:$true] %s72
      %75 = dma.hbm_to_vmem [thread:$0]  %s13, 16, %s73, [#allocation5]
    $region57: #{adversary_forward.1} parent=1 // pred_fallthru
      _
    // Predicated region
    $region58: #{adversary_forward.1} parent=1 // pred_check
      _
    $region59: #{adversary_forward.1} parent=1 // pred_check_branch
      %77 = sbr.rel (0) target = $region61
    $region60: #{adversary_forward.1} parent=1 // pred_region
      _
    $region61: #{adversary_forward.1} parent=1 // pred_fallthru
      _
    // Predicated region
    $region62: #{adversary_forward.1} parent=1 // pred_check
      _
    $region63: #{adversary_forward.1} parent=1 // pred_check_branch
      %79 = sbr.rel (0) target = $region65
    $region64: #{adversary_forward.1} parent=1 // pred_region
      %s81 = ssub.s32 16, 16
      %82 = vsyncadd [#allocation8], %s81
      %s84 = sshll.u32 [#allocation7], 4
      %s85 = int_to_ptr.vmem [resolvable:$true] %s84
      %87 = dma.hbm_to_vmem [thread:$0]  %s15, 16, %s85, [#allocation8]
    $region65: #{adversary_forward.1} parent=1 // pred_fallthru
      _
    // Predicated region
    $region66: #{adversary_forward.1} parent=1 // pred_check
      _
    $region67: #{adversary_forward.1} parent=1 // pred_check_branch
      %89 = sbr.rel (0) target = $region69
    $region68: #{adversary_forward.1} parent=1 // pred_region
      %90 = dma.done [#allocation3], 16
    $region69: #{adversary_forward.1} parent=1 // pred_fallthru
      _
    // Predicated region
    $region70: #{adversary_forward.1} parent=1 // pred_check
      _
    $region71: #{adversary_forward.1} parent=1 // pred_check_branch
      %92 = sbr.rel (0) target = $region73
    $region72: #{adversary_forward.1} parent=1 // pred_region
      %93 = dma.done [#allocation5], 16
    $region73: #{adversary_forward.1} parent=1 // pred_fallthru
      _
    // Predicated region
    $region74: #{adversary_forward.1} parent=1 // pred_check
      _
    $region75: #{adversary_forward.1} parent=1 // pred_check_branch
      %95 = sbr.rel (0) target = $region77
    $region76: #{adversary_forward.1} parent=1 // pred_region
      %96 = dma.done [#allocation5], 16
    $region77: #{adversary_forward.1} parent=1 // pred_fallthru
      _
    // Predicated region
    $region78: #{adversary_forward.1} parent=1 // pred_check
      _
    $region79: #{adversary_forward.1} parent=1 // pred_check_branch
      %98 = sbr.rel (0) target = $region81
    $region80: #{adversary_forward.1} parent=1 // pred_region
      %99 = dma.done [#allocation8], 16
    $region81: #{adversary_forward.1} parent=1 // pred_fallthru
      _
    %v100 = vld [vmem:[%s0] sm:$0xff]
    %v101 = vld [vmem:[%s0 + $0x8] sm:$0xff]
    %v102 = vld [vmem:[%s0 + $0x10] sm:$0xff]
    %v103 = vld [vmem:[%s0 + $0x18] sm:$0xff]
    %v104 = vld [vmem:[%s0 + $0x20] sm:$0xff]
    %v105 = vld [vmem:[%s0 + $0x28] sm:$0xff]
    %v106 = vld [vmem:[%s0 + $0x30] sm:$0xff]
    %v107 = vld [vmem:[%s0 + $0x38] sm:$0xff]
    %v108 = vld [vmem:[%s0 + $0x40] sm:$0xff]
    %v109 = vld [vmem:[%s0 + $0x48] sm:$0xff]
    %v110 = vld [vmem:[%s0 + $0x50] sm:$0xff]
    %v111 = vld [vmem:[%s0 + $0x58] sm:$0xff]
    %v112 = vld [vmem:[%s0 + $0x60] sm:$0xff]
    %v113 = vld [vmem:[%s0 + $0x68] sm:$0xff]
    %v114 = vld [vmem:[%s0 + $0x70] sm:$0xff]
    %v115 = vld [vmem:[%s0 + $0x78] sm:$0xff]
    %v116 = vld [vmem:[%s1] sm:$0xff]
    %v117 = vld [vmem:[%s1 + $0x8] sm:$0xff]
    %v118 = vld [vmem:[%s1 + $0x10] sm:$0xff]
    %v119 = vld [vmem:[%s1 + $0x18] sm:$0xff]
    %v120 = vld [vmem:[%s1 + $0x20] sm:$0xff]
    %v121 = vld [vmem:[%s1 + $0x28] sm:$0xff]
    %v122 = vld [vmem:[%s1 + $0x30] sm:$0xff]
    %v123 = vld [vmem:[%s1 + $0x38] sm:$0xff]
    %v124 = vld [vmem:[%s1 + $0x40] sm:$0xff]
    %v125 = vld [vmem:[%s1 + $0x48] sm:$0xff]
    %v126 = vld [vmem:[%s1 + $0x50] sm:$0xff]
    %v127 = vld [vmem:[%s1 + $0x58] sm:$0xff]
    %v128 = vld [vmem:[%s1 + $0x60] sm:$0xff]
    %v129 = vld [vmem:[%s1 + $0x68] sm:$0xff]
    %v130 = vld [vmem:[%s1 + $0x70] sm:$0xff]
    %v131 = vld [vmem:[%s1 + $0x78] sm:$0xff]
    %v132 = vld [vmem:[%s3] sm:$0xff]
    %v133 = vld [vmem:[%s3 + $0x8] sm:$0xff]
    %v134 = vld [vmem:[%s3 + $0x10] sm:$0xff]
    %v135 = vld [vmem:[%s3 + $0x18] sm:$0xff]
    %v136 = vld [vmem:[%s4] sm:$0xff]
    %v137 = vld [vmem:[%s4 + $0x8] sm:$0xff]
    %v138 = vld [vmem:[%s4 + $0x10] sm:$0xff]
    %v139 = vld [vmem:[%s4 + $0x18] sm:$0xff]
    %vm140 = vcmask 261120
    %v142 = vsel %vm140, %v116, 0
    %v145 = vsel %vm140, %v117, 0
    %v148 = vsel %vm140, %v118, 0
    %v151 = vsel %vm140, %v119, 0
    %v154 = vsel %vm140, %v120, 0
    %v157 = vsel %vm140, %v121, 0
    %v160 = vsel %vm140, %v122, 0
    %v163 = vsel %vm140, %v123, 0
    %v166 = vsel %vm140, %v124, 0
    %v169 = vsel %vm140, %v125, 0
    %v172 = vsel %vm140, %v126, 0
    %v175 = vsel %vm140, %v127, 0
    %v178 = vsel %vm140, %v128, 0
    %v181 = vsel %vm140, %v129, 0
    %v184 = vsel %vm140, %v130, 0
    %v187 = vsel %vm140, %v131, 0
    %189 = vmatprep.subr.mxu0 0.0
    %190 = vmatpush1.msra.mxu0 0.0
    %191 = vmatprep.subr.mxu0 0.0
    %192 = vmatpush1.msra.mxu0 0.0
    %193 = vmatprep.subr.mxu0 0.0
    %194 = vmatpush1.msra.mxu0 0.0
    %195 = vmatprep.subr.mxu0 0.0
    %196 = vmatpush1.msra.mxu0 0.0
    %197 = vmatprep.subr.mxu0 0.0
    %198 = vmatpush1.msra.mxu0 0.0
    %199 = vmatprep.subr.mxu0 0.0
    %200 = vmatpush1.msra.mxu0 0.0
    %201 = vmatprep.subr.mxu0 0.0
    %202 = vmatpush1.msra.mxu0 0.0
    %203 = vmatprep.subr.mxu0 0.0
    %204 = vmatpush1.msra.mxu0 0.0
    %205 = vmatprep.subr.mxu0 0.0
    %206 = vmatpush1.msra.mxu0 0.0
    %207 = vmatprep.subr.mxu0 0.0
    %208 = vmatpush1.msra.mxu0 0.0
    %209 = vmatprep.subr.mxu0 0.0
    %210 = vmatpush1.msra.mxu0 0.0
    %211 = vmatprep.subr.mxu0 0.0
    %212 = vmatpush1.msra.mxu0 0.0
    %213 = vmatprep.subr.mxu0 0.0
    %214 = vmatpush1.msra.mxu0 %v139
    %215 = vmatprep.subr.mxu0 0.0
    %216 = vmatpush1.msra.mxu0 %v138
    %217 = vmatprep.subr.mxu0 0.0
    %218 = vmatpush1.msra.mxu0 %v137
    %219 = vmatprep.subr.mxu0 0.0
    %220 = vmatpush1.msra.mxu0 %v136
    %221 = vmatprep.subr.mxu0 0.0
    %222 = vmatpush2.msra.mxu0 0.0
    %223 = vmatprep.subr.mxu0 0.0
    %224 = vmatpush2.msra.mxu0 0.0
    %225 = vmatprep.subr.mxu0 0.0
    %226 = vmatpush2.msra.mxu0 0.0
    %227 = vmatprep.subr.mxu0 0.0
    %228 = vmatpush2.msra.mxu0 0.0
    %229 = vmatprep.subr.mxu0 0.0
    %230 = vmatpush2.msra.mxu0 0.0
    %231 = vmatprep.subr.mxu0 0.0
    %232 = vmatpush2.msra.mxu0 0.0
    %233 = vmatprep.subr.mxu0 0.0
    %234 = vmatpush2.msra.mxu0 0.0
    %235 = vmatprep.subr.mxu0 0.0
    %236 = vmatpush2.msra.mxu0 0.0
    %237 = vmatprep.subr.mxu0 0.0
    %238 = vmatpush2.msra.mxu0 0.0
    %239 = vmatprep.subr.mxu0 0.0
    %240 = vmatpush2.msra.mxu0 0.0
    %241 = vmatprep.subr.mxu0 0.0
    %242 = vmatpush2.msra.mxu0 0.0
    %243 = vmatprep.subr.mxu0 0.0
    %244 = vmatpush2.msra.mxu0 0.0
    %245 = vmatprep.subr.mxu0 0.0
    %246 = vmatpush2.msra.mxu0 0.0
    %247 = vmatprep.subr.mxu0 0.0
    %248 = vmatpush2.msra.mxu0 0.0
    %249 = vmatprep.subr.mxu0 0.0
    %250 = vmatpush2.msra.mxu0 0.0
    %251 = vmatprep.subr.mxu0 0.0
    %252 = vmatpush2.msra.mxu0 0.0
    %253 = vmatprep.mubr.f32.mxu0 0.0
    %254 = vmatmul.mubr.f32.gmra.mxu0 %v142
    %v255 = vpop.f32.mrf.mxu0
    %v256 = vadd.f32 0.0, %v255
    %v257 = vpop.f32.mrf.mxu0
    %258 = vmatprep.mubr.f32.mxu0 0.0
    %259 = vmatmul.mubr.f32.gmra.mxu0 %v145
    %v260 = vpop.f32.mrf.mxu0
    %v261 = vadd.f32 0.0, %v260
    %v262 = vpop.f32.mrf.mxu0
    %263 = vmatprep.mubr.f32.mxu0 0.0
    %264 = vmatmul.mubr.f32.gmra.mxu0 %v148
    %v265 = vpop.f32.mrf.mxu0
    %v266 = vadd.f32 0.0, %v265
    %v267 = vpop.f32.mrf.mxu0
    %268 = vmatprep.mubr.f32.mxu0 0.0
    %269 = vmatmul.mubr.f32.gmra.mxu0 %v151
    %v270 = vpop.f32.mrf.mxu0
    %v271 = vadd.f32 0.0, %v270
    %v272 = vpop.f32.mrf.mxu0
    %273 = vmatprep.mubr.f32.mxu0 0.0
    %274 = vmatmul.mubr.f32.gmra.mxu0 %v154
    %v275 = vpop.f32.mrf.mxu0
    %v276 = vadd.f32 0.0, %v275
    %v277 = vpop.f32.mrf.mxu0
    %278 = vmatprep.mubr.f32.mxu0 0.0
    %279 = vmatmul.mubr.f32.gmra.mxu0 %v157
    %v280 = vpop.f32.mrf.mxu0
    %v281 = vadd.f32 0.0, %v280
    %v282 = vpop.f32.mrf.mxu0
    %283 = vmatprep.mubr.f32.mxu0 0.0
    %284 = vmatmul.mubr.f32.gmra.mxu0 %v160
    %v285 = vpop.f32.mrf.mxu0
    %v286 = vadd.f32 0.0, %v285
    %v287 = vpop.f32.mrf.mxu0
    %288 = vmatprep.mubr.f32.mxu0 0.0
    %289 = vmatmul.mubr.f32.gmra.mxu0 %v163
    %v290 = vpop.f32.mrf.mxu0
    %v291 = vadd.f32 0.0, %v290
    %v292 = vpop.f32.mrf.mxu0
    %293 = vmatprep.mubr.f32.mxu0 0.0
    %294 = vmatmul.mubr.f32.gmra.mxu0 %v166
    %v295 = vpop.f32.mrf.mxu0
    %v296 = vadd.f32 0.0, %v295
    %v297 = vpop.f32.mrf.mxu0
    %298 = vmatprep.mubr.f32.mxu0 0.0
    %299 = vmatmul.mubr.f32.gmra.mxu0 %v169
    %v300 = vpop.f32.mrf.mxu0
    %v301 = vadd.f32 0.0, %v300
    %v302 = vpop.f32.mrf.mxu0
    %303 = vmatprep.mubr.f32.mxu0 0.0
    %304 = vmatmul.mubr.f32.gmra.mxu0 %v172
    %v305 = vpop.f32.mrf.mxu0
    %v306 = vadd.f32 0.0, %v305
    %v307 = vpop.f32.mrf.mxu0
    %308 = vmatprep.mubr.f32.mxu0 0.0
    %309 = vmatmul.mubr.f32.gmra.mxu0 %v175
    %v310 = vpop.f32.mrf.mxu0
    %v311 = vadd.f32 0.0, %v310
    %v312 = vpop.f32.mrf.mxu0
    %313 = vmatprep.mubr.f32.mxu0 0.0
    %314 = vmatmul.mubr.f32.gmra.mxu0 %v178
    %v315 = vpop.f32.mrf.mxu0
    %v316 = vadd.f32 0.0, %v315
    %v317 = vpop.f32.mrf.mxu0
    %318 = vmatprep.mubr.f32.mxu0 0.0
    %319 = vmatmul.mubr.f32.gmra.mxu0 %v181
    %v320 = vpop.f32.mrf.mxu0
    %v321 = vadd.f32 0.0, %v320
    %v322 = vpop.f32.mrf.mxu0
    %323 = vmatprep.mubr.f32.mxu0 0.0
    %324 = vmatmul.mubr.f32.gmra.mxu0 %v184
    %v325 = vpop.f32.mrf.mxu0
    %v326 = vadd.f32 0.0, %v325
    %v327 = vpop.f32.mrf.mxu0
    %328 = vmatprep.mubr.f32.mxu0 0.0
    %329 = vmatmul.mubr.f32.gmra.mxu0 %v187
    %v330 = vpop.f32.mrf.mxu0
    %v331 = vadd.f32 0.0, %v330
    %v332 = vpop.f32.mrf.mxu0
    %333 = vdwg.mxu0
    %v335 = vsel %vm140, %v100, 0
    %v338 = vsel %vm140, %v101, 0
    %v341 = vsel %vm140, %v102, 0
    %v344 = vsel %vm140, %v103, 0
    %v347 = vsel %vm140, %v104, 0
    %v350 = vsel %vm140, %v105, 0
    %v353 = vsel %vm140, %v106, 0
    %v356 = vsel %vm140, %v107, 0
    %v359 = vsel %vm140, %v108, 0
    %v362 = vsel %vm140, %v109, 0
    %v365 = vsel %vm140, %v110, 0
    %v368 = vsel %vm140, %v111, 0
    %v371 = vsel %vm140, %v112, 0
    %v374 = vsel %vm140, %v113, 0
    %v377 = vsel %vm140, %v114, 0
    %v380 = vsel %vm140, %v115, 0
    %382 = vmatprep.subr.mxu0 0.0
    %383 = vmatpush1.msra.mxu0 0.0
    %384 = vmatprep.subr.mxu0 0.0
    %385 = vmatpush1.msra.mxu0 0.0
    %386 = vmatprep.subr.mxu0 0.0
    %387 = vmatpush1.msra.mxu0 0.0
    %388 = vmatprep.subr.mxu0 0.0
    %389 = vmatpush1.msra.mxu0 0.0
    %390 = vmatprep.subr.mxu0 0.0
    %391 = vmatpush1.msra.mxu0 0.0
    %392 = vmatprep.subr.mxu0 0.0
    %393 = vmatpush1.msra.mxu0 0.0
    %394 = vmatprep.subr.mxu0 0.0
    %395 = vmatpush1.msra.mxu0 0.0
    %396 = vmatprep.subr.mxu0 0.0
    %397 = vmatpush1.msra.mxu0 0.0
    %398 = vmatprep.subr.mxu0 0.0
    %399 = vmatpush1.msra.mxu0 0.0
    %400 = vmatprep.subr.mxu0 0.0
    %401 = vmatpush1.msra.mxu0 0.0
    %402 = vmatprep.subr.mxu0 0.0
    %403 = vmatpush1.msra.mxu0 0.0
    %404 = vmatprep.subr.mxu0 0.0
    %405 = vmatpush1.msra.mxu0 0.0
    %406 = vmatprep.subr.mxu0 0.0
    %407 = vmatpush1.msra.mxu0 %v135
    %408 = vmatprep.subr.mxu0 0.0
    %409 = vmatpush1.msra.mxu0 %v134
    %410 = vmatprep.subr.mxu0 0.0
    %411 = vmatpush1.msra.mxu0 %v133
    %412 = vmatprep.subr.mxu0 0.0
    %413 = vmatpush1.msra.mxu0 %v132
    %414 = vmatprep.subr.mxu0 0.0
    %415 = vmatpush2.msra.mxu0 0.0
    %416 = vmatprep.subr.mxu0 0.0
    %417 = vmatpush2.msra.mxu0 0.0
    %418 = vmatprep.subr.mxu0 0.0
    %419 = vmatpush2.msra.mxu0 0.0
    %420 = vmatprep.subr.mxu0 0.0
    %421 = vmatpush2.msra.mxu0 0.0
    %422 = vmatprep.subr.mxu0 0.0
    %423 = vmatpush2.msra.mxu0 0.0
    %424 = vmatprep.subr.mxu0 0.0
    %425 = vmatpush2.msra.mxu0 0.0
    %426 = vmatprep.subr.mxu0 0.0
    %427 = vmatpush2.msra.mxu0 0.0
    %428 = vmatprep.subr.mxu0 0.0
    %429 = vmatpush2.msra.mxu0 0.0
    %430 = vmatprep.subr.mxu0 0.0
    %431 = vmatpush2.msra.mxu0 0.0
    %432 = vmatprep.subr.mxu0 0.0
    %433 = vmatpush2.msra.mxu0 0.0
    %434 = vmatprep.subr.mxu0 0.0
    %435 = vmatpush2.msra.mxu0 0.0
    %436 = vmatprep.subr.mxu0 0.0
    %437 = vmatpush2.msra.mxu0 0.0
    %438 = vmatprep.subr.mxu0 0.0
    %439 = vmatpush2.msra.mxu0 0.0
    %440 = vmatprep.subr.mxu0 0.0
    %441 = vmatpush2.msra.mxu0 0.0
    %442 = vmatprep.subr.mxu0 0.0
    %443 = vmatpush2.msra.mxu0 0.0
    %444 = vmatprep.subr.mxu0 0.0
    %445 = vmatpush2.msra.mxu0 0.0
    %446 = vmatprep.mubr.f32.mxu0 0.0
    %447 = vmatmul.mubr.f32.gmra.mxu0 %v335
    %v448 = vpop.f32.mrf.mxu0
    %v449 = vadd.f32 %v256, %v448
    %v450 = vpop.f32.mrf.mxu0
    %451 = vmatprep.mubr.f32.mxu0 0.0
    %452 = vmatmul.mubr.f32.gmra.mxu0 %v338
    %v453 = vpop.f32.mrf.mxu0
    %v454 = vadd.f32 %v261, %v453
    %v455 = vpop.f32.mrf.mxu0
    %456 = vmatprep.mubr.f32.mxu0 0.0
    %457 = vmatmul.mubr.f32.gmra.mxu0 %v341
    %v458 = vpop.f32.mrf.mxu0
    %v459 = vadd.f32 %v266, %v458
    %v460 = vpop.f32.mrf.mxu0
    %461 = vmatprep.mubr.f32.mxu0 0.0
    %462 = vmatmul.mubr.f32.gmra.mxu0 %v344
    %v463 = vpop.f32.mrf.mxu0
    %v464 = vadd.f32 %v271, %v463
    %v465 = vpop.f32.mrf.mxu0
    %466 = vmatprep.mubr.f32.mxu0 0.0
    %467 = vmatmul.mubr.f32.gmra.mxu0 %v347
    %v468 = vpop.f32.mrf.mxu0
    %v469 = vadd.f32 %v276, %v468
    %v470 = vpop.f32.mrf.mxu0
    %471 = vmatprep.mubr.f32.mxu0 0.0
    %472 = vmatmul.mubr.f32.gmra.mxu0 %v350
    %v473 = vpop.f32.mrf.mxu0
    %v474 = vadd.f32 %v281, %v473
    %v475 = vpop.f32.mrf.mxu0
    %476 = vmatprep.mubr.f32.mxu0 0.0
    %477 = vmatmul.mubr.f32.gmra.mxu0 %v353
    %v478 = vpop.f32.mrf.mxu0
    %v479 = vadd.f32 %v286, %v478
    %v480 = vpop.f32.mrf.mxu0
    %481 = vmatprep.mubr.f32.mxu0 0.0
    %482 = vmatmul.mubr.f32.gmra.mxu0 %v356
    %v483 = vpop.f32.mrf.mxu0
    %v484 = vadd.f32 %v291, %v483
    %v485 = vpop.f32.mrf.mxu0
    %486 = vmatprep.mubr.f32.mxu0 0.0
    %487 = vmatmul.mubr.f32.gmra.mxu0 %v359
    %v488 = vpop.f32.mrf.mxu0
    %v489 = vadd.f32 %v296, %v488
    %v490 = vpop.f32.mrf.mxu0
    %491 = vmatprep.mubr.f32.mxu0 0.0
    %492 = vmatmul.mubr.f32.gmra.mxu0 %v362
    %v493 = vpop.f32.mrf.mxu0
    %v494 = vadd.f32 %v301, %v493
    %v495 = vpop.f32.mrf.mxu0
    %496 = vmatprep.mubr.f32.mxu0 0.0
    %497 = vmatmul.mubr.f32.gmra.mxu0 %v365
    %v498 = vpop.f32.mrf.mxu0
    %v499 = vadd.f32 %v306, %v498
    %v500 = vpop.f32.mrf.mxu0
    %501 = vmatprep.mubr.f32.mxu0 0.0
    %502 = vmatmul.mubr.f32.gmra.mxu0 %v368
    %v503 = vpop.f32.mrf.mxu0
    %v504 = vadd.f32 %v311, %v503
    %v505 = vpop.f32.mrf.mxu0
    %506 = vmatprep.mubr.f32.mxu0 0.0
    %507 = vmatmul.mubr.f32.gmra.mxu0 %v371
    %v508 = vpop.f32.mrf.mxu0
    %v509 = vadd.f32 %v316, %v508
    %v510 = vpop.f32.mrf.mxu0
    %511 = vmatprep.mubr.f32.mxu0 0.0
    %512 = vmatmul.mubr.f32.gmra.mxu0 %v374
    %v513 = vpop.f32.mrf.mxu0
    %v514 = vadd.f32 %v321, %v513
    %v515 = vpop.f32.mrf.mxu0
    %516 = vmatprep.mubr.f32.mxu0 0.0
    %517 = vmatmul.mubr.f32.gmra.mxu0 %v377
    %v518 = vpop.f32.mrf.mxu0
    %v519 = vadd.f32 %v326, %v518
    %v520 = vpop.f32.mrf.mxu0
    %521 = vmatprep.mubr.f32.mxu0 0.0
    %522 = vmatmul.mubr.f32.gmra.mxu0 %v380
    %v523 = vpop.f32.mrf.mxu0
    %v524 = vadd.f32 %v331, %v523
    %v525 = vpop.f32.mrf.mxu0
    %526 = vdwg.mxu0
    %v527 = vld [vmem:[%s5] sm:$0x1]
    %v529 = vlaneseq
    %v530 = vshrl.u32 %v529, 7
    %v531 = vsub.s32 0, %v530
    %v532 = vrot.slane %v527, %v531
    %v534 = vadd.f32 %v449, %v532
    %v535 = vadd.f32 %v454, %v532
    %v536 = vadd.f32 %v459, %v532
    %v537 = vadd.f32 %v464, %v532
    %v538 = vadd.f32 %v469, %v532
    %v539 = vadd.f32 %v474, %v532
    %v540 = vadd.f32 %v479, %v532
    %v541 = vadd.f32 %v484, %v532
    %v542 = vadd.f32 %v489, %v532
    %v543 = vadd.f32 %v494, %v532
    %v544 = vadd.f32 %v499, %v532
    %v545 = vadd.f32 %v504, %v532
    %v546 = vadd.f32 %v509, %v532
    %v547 = vadd.f32 %v514, %v532
    %v548 = vadd.f32 %v519, %v532
    %v549 = vadd.f32 %v524, %v532
    %v550 = vld [vmem:[%s6] sm:$0xff]
    %v551 = vld [vmem:[%s6 + $0x8] sm:$0xff]
    %v552 = vld [vmem:[%s6 + $0x10] sm:$0xff]
    %v553 = vld [vmem:[%s6 + $0x18] sm:$0xff]
    %v554 = vld [vmem:[%s6 + $0x20] sm:$0xff]
    %v555 = vld [vmem:[%s6 + $0x28] sm:$0xff]
    %v556 = vld [vmem:[%s6 + $0x30] sm:$0xff]
    %v557 = vld [vmem:[%s6 + $0x38] sm:$0xff]
    %v558 = vld [vmem:[%s6 + $0x40] sm:$0xff]
    %v559 = vld [vmem:[%s6 + $0x48] sm:$0xff]
    %v560 = vld [vmem:[%s6 + $0x50] sm:$0xff]
    %v561 = vld [vmem:[%s6 + $0x58] sm:$0xff]
    %v562 = vld [vmem:[%s6 + $0x60] sm:$0xff]
    %v563 = vld [vmem:[%s6 + $0x68] sm:$0xff]
    %v564 = vld [vmem:[%s6 + $0x70] sm:$0xff]
    %v565 = vld [vmem:[%s6 + $0x78] sm:$0xff]
    %v566 = vld [vmem:[%s7] sm:$0x1]
    %v568 = vlaneseq
    %v569 = vshrl.u32 %v568, 7
    %v570 = vsub.s32 0, %v569
    %v571 = vrot.slane %v566, %v570
    %573 = vmatprep.subr.mxu0 0.0
    %574 = vmatpush1.msra.mxu0 %v565
    %575 = vmatprep.subr.mxu0 0.0
    %576 = vmatpush1.msra.mxu0 %v564
    %577 = vmatprep.subr.mxu0 0.0
    %578 = vmatpush1.msra.mxu0 %v563
    %579 = vmatprep.subr.mxu0 0.0
    %580 = vmatpush1.msra.mxu0 %v562
    %581 = vmatprep.subr.mxu0 0.0
    %582 = vmatpush1.msra.mxu0 %v561
    %583 = vmatprep.subr.mxu0 0.0
    %584 = vmatpush1.msra.mxu0 %v560
    %585 = vmatprep.subr.mxu0 0.0
    %586 = vmatpush1.msra.mxu0 %v559
    %587 = vmatprep.subr.mxu0 0.0
    %588 = vmatpush1.msra.mxu0 %v558
    %589 = vmatprep.subr.mxu0 0.0
    %590 = vmatpush1.msra.mxu0 %v557
    %591 = vmatprep.subr.mxu0 0.0
    %592 = vmatpush1.msra.mxu0 %v556
    %593 = vmatprep.subr.mxu0 0.0
    %594 = vmatpush1.msra.mxu0 %v555
    %595 = vmatprep.subr.mxu0 0.0
    %596 = vmatpush1.msra.mxu0 %v554
    %597 = vmatprep.subr.mxu0 0.0
    %598 = vmatpush1.msra.mxu0 %v553
    %599 = vmatprep.subr.mxu0 0.0
    %600 = vmatpush1.msra.mxu0 %v552
    %601 = vmatprep.subr.mxu0 0.0
    %602 = vmatpush1.msra.mxu0 %v551
    %603 = vmatprep.subr.mxu0 0.0
    %604 = vmatpush1.msra.mxu0 %v550
    %605 = vmatprep.subr.mxu0 0.0
    %606 = vmatpush2.msra.mxu0 0.0
    %607 = vmatprep.subr.mxu0 0.0
    %608 = vmatpush2.msra.mxu0 0.0
    %609 = vmatprep.subr.mxu0 0.0
    %610 = vmatpush2.msra.mxu0 0.0
    %611 = vmatprep.subr.mxu0 0.0
    %612 = vmatpush2.msra.mxu0 0.0
    %613 = vmatprep.subr.mxu0 0.0
    %614 = vmatpush2.msra.mxu0 0.0
    %615 = vmatprep.subr.mxu0 0.0
    %616 = vmatpush2.msra.mxu0 0.0
    %617 = vmatprep.subr.mxu0 0.0
    %618 = vmatpush2.msra.mxu0 0.0
    %619 = vmatprep.subr.mxu0 0.0
    %620 = vmatpush2.msra.mxu0 0.0
    %621 = vmatprep.subr.mxu0 0.0
    %622 = vmatpush2.msra.mxu0 0.0
    %623 = vmatprep.subr.mxu0 0.0
    %624 = vmatpush2.msra.mxu0 0.0
    %625 = vmatprep.subr.mxu0 0.0
    %626 = vmatpush2.msra.mxu0 0.0
    %627 = vmatprep.subr.mxu0 0.0
    %628 = vmatpush2.msra.mxu0 0.0
    %629 = vmatprep.subr.mxu0 0.0
    %630 = vmatpush2.msra.mxu0 0.0
    %631 = vmatprep.subr.mxu0 0.0
    %632 = vmatpush2.msra.mxu0 0.0
    %633 = vmatprep.subr.mxu0 0.0
    %634 = vmatpush2.msra.mxu0 0.0
    %635 = vmatprep.subr.mxu0 0.0
    %636 = vmatpush2.msra.mxu0 0.0
    %637 = vmatprep.mubr.f32.mxu0 0.0
    %638 = vmatmul.mubr.f32.gmra.mxu0 %v534
    %v639 = vpop.f32.mrf.mxu0
    %v640 = vadd.f32 %v571, %v639
    %v641 = vpop.f32.mrf.mxu0
    %642 = vmatprep.mubr.f32.mxu0 0.0
    %643 = vmatmul.mubr.f32.gmra.mxu0 %v535
    %v644 = vpop.f32.mrf.mxu0
    %v645 = vadd.f32 %v571, %v644
    %v646 = vpop.f32.mrf.mxu0
    %647 = vmatprep.mubr.f32.mxu0 0.0
    %648 = vmatmul.mubr.f32.gmra.mxu0 %v536
    %v649 = vpop.f32.mrf.mxu0
    %v650 = vadd.f32 %v571, %v649
    %v651 = vpop.f32.mrf.mxu0
    %652 = vmatprep.mubr.f32.mxu0 0.0
    %653 = vmatmul.mubr.f32.gmra.mxu0 %v537
    %v654 = vpop.f32.mrf.mxu0
    %v655 = vadd.f32 %v571, %v654
    %v656 = vpop.f32.mrf.mxu0
    %657 = vmatprep.mubr.f32.mxu0 0.0
    %658 = vmatmul.mubr.f32.gmra.mxu0 %v538
    %v659 = vpop.f32.mrf.mxu0
    %v660 = vadd.f32 %v571, %v659
    %v661 = vpop.f32.mrf.mxu0
    %662 = vmatprep.mubr.f32.mxu0 0.0
    %663 = vmatmul.mubr.f32.gmra.mxu0 %v539
    %v664 = vpop.f32.mrf.mxu0
    %v665 = vadd.f32 %v571, %v664
    %v666 = vpop.f32.mrf.mxu0
    %667 = vmatprep.mubr.f32.mxu0 0.0
    %668 = vmatmul.mubr.f32.gmra.mxu0 %v540
    %v669 = vpop.f32.mrf.mxu0
    %v670 = vadd.f32 %v571, %v669
    %v671 = vpop.f32.mrf.mxu0
    %672 = vmatprep.mubr.f32.mxu0 0.0
    %673 = vmatmul.mubr.f32.gmra.mxu0 %v541
    %v674 = vpop.f32.mrf.mxu0
    %v675 = vadd.f32 %v571, %v674
    %v676 = vpop.f32.mrf.mxu0
    %677 = vmatprep.mubr.f32.mxu0 0.0
    %678 = vmatmul.mubr.f32.gmra.mxu0 %v542
    %v679 = vpop.f32.mrf.mxu0
    %v680 = vadd.f32 %v571, %v679
    %v681 = vpop.f32.mrf.mxu0
    %682 = vmatprep.mubr.f32.mxu0 0.0
    %683 = vmatmul.mubr.f32.gmra.mxu0 %v543
    %v684 = vpop.f32.mrf.mxu0
    %v685 = vadd.f32 %v571, %v684
    %v686 = vpop.f32.mrf.mxu0
    %687 = vmatprep.mubr.f32.mxu0 0.0
    %688 = vmatmul.mubr.f32.gmra.mxu0 %v544
    %v689 = vpop.f32.mrf.mxu0
    %v690 = vadd.f32 %v571, %v689
    %v691 = vpop.f32.mrf.mxu0
    %692 = vmatprep.mubr.f32.mxu0 0.0
    %693 = vmatmul.mubr.f32.gmra.mxu0 %v545
    %v694 = vpop.f32.mrf.mxu0
    %v695 = vadd.f32 %v571, %v694
    %v696 = vpop.f32.mrf.mxu0
    %697 = vmatprep.mubr.f32.mxu0 0.0
    %698 = vmatmul.mubr.f32.gmra.mxu0 %v546
    %v699 = vpop.f32.mrf.mxu0
    %v700 = vadd.f32 %v571, %v699
    %v701 = vpop.f32.mrf.mxu0
    %702 = vmatprep.mubr.f32.mxu0 0.0
    %703 = vmatmul.mubr.f32.gmra.mxu0 %v547
    %v704 = vpop.f32.mrf.mxu0
    %v705 = vadd.f32 %v571, %v704
    %v706 = vpop.f32.mrf.mxu0
    %707 = vmatprep.mubr.f32.mxu0 0.0
    %708 = vmatmul.mubr.f32.gmra.mxu0 %v548
    %v709 = vpop.f32.mrf.mxu0
    %v710 = vadd.f32 %v571, %v709
    %v711 = vpop.f32.mrf.mxu0
    %712 = vmatprep.mubr.f32.mxu0 0.0
    %713 = vmatmul.mubr.f32.gmra.mxu0 %v549
    %v714 = vpop.f32.mrf.mxu0
    %v715 = vadd.f32 %v571, %v714
    %v716 = vpop.f32.mrf.mxu0
    %717 = vdwg.mxu0
    %v718 = vld [vmem:[%s8] sm:$0xff]
    %v719 = vld [vmem:[%s8 + $0x8] sm:$0xff]
    %v720 = vld [vmem:[%s8 + $0x10] sm:$0xff]
    %v721 = vld [vmem:[%s8 + $0x18] sm:$0xff]
    %v722 = vld [vmem:[%s8 + $0x20] sm:$0xff]
    %v723 = vld [vmem:[%s8 + $0x28] sm:$0xff]
    %v724 = vld [vmem:[%s8 + $0x30] sm:$0xff]
    %v725 = vld [vmem:[%s8 + $0x38] sm:$0xff]
    %v726 = vld [vmem:[%s8 + $0x40] sm:$0xff]
    %v727 = vld [vmem:[%s8 + $0x48] sm:$0xff]
    %v728 = vld [vmem:[%s8 + $0x50] sm:$0xff]
    %v729 = vld [vmem:[%s8 + $0x58] sm:$0xff]
    %v730 = vld [vmem:[%s8 + $0x60] sm:$0xff]
    %v731 = vld [vmem:[%s8 + $0x68] sm:$0xff]
    %v732 = vld [vmem:[%s8 + $0x70] sm:$0xff]
    %v733 = vld [vmem:[%s8 + $0x78] sm:$0xff]
    %v734 = vld [vmem:[#allocation2] sm:$0x1]
    %v736 = vlaneseq
    %v737 = vshrl.u32 %v736, 7
    %v738 = vsub.s32 0, %v737
    %v739 = vrot.slane %v734, %v738
    %741 = vmatprep.subr.mxu0 0.0
    %742 = vmatpush1.msra.mxu0 %v733
    %743 = vmatprep.subr.mxu0 0.0
    %744 = vmatpush1.msra.mxu0 %v732
    %745 = vmatprep.subr.mxu0 0.0
    %746 = vmatpush1.msra.mxu0 %v731
    %747 = vmatprep.subr.mxu0 0.0
    %748 = vmatpush1.msra.mxu0 %v730
    %749 = vmatprep.subr.mxu0 0.0
    %750 = vmatpush1.msra.mxu0 %v729
    %751 = vmatprep.subr.mxu0 0.0
    %752 = vmatpush1.msra.mxu0 %v728
    %753 = vmatprep.subr.mxu0 0.0
    %754 = vmatpush1.msra.mxu0 %v727
    %755 = vmatprep.subr.mxu0 0.0
    %756 = vmatpush1.msra.mxu0 %v726
    %757 = vmatprep.subr.mxu0 0.0
    %758 = vmatpush1.msra.mxu0 %v725
    %759 = vmatprep.subr.mxu0 0.0
    %760 = vmatpush1.msra.mxu0 %v724
    %761 = vmatprep.subr.mxu0 0.0
    %762 = vmatpush1.msra.mxu0 %v723
    %763 = vmatprep.subr.mxu0 0.0
    %764 = vmatpush1.msra.mxu0 %v722
    %765 = vmatprep.subr.mxu0 0.0
    %766 = vmatpush1.msra.mxu0 %v721
    %767 = vmatprep.subr.mxu0 0.0
    %768 = vmatpush1.msra.mxu0 %v720
    %769 = vmatprep.subr.mxu0 0.0
    %770 = vmatpush1.msra.mxu0 %v719
    %771 = vmatprep.subr.mxu0 0.0
    %772 = vmatpush1.msra.mxu0 %v718
    %773 = vmatprep.subr.mxu0 0.0
    %774 = vmatpush2.msra.mxu0 0.0
    %775 = vmatprep.subr.mxu0 0.0
    %776 = vmatpush2.msra.mxu0 0.0
    %777 = vmatprep.subr.mxu0 0.0
    %778 = vmatpush2.msra.mxu0 0.0
    %779 = vmatprep.subr.mxu0 0.0
    %780 = vmatpush2.msra.mxu0 0.0
    %781 = vmatprep.subr.mxu0 0.0
    %782 = vmatpush2.msra.mxu0 0.0
    %783 = vmatprep.subr.mxu0 0.0
    %784 = vmatpush2.msra.mxu0 0.0
    %785 = vmatprep.subr.mxu0 0.0
    %786 = vmatpush2.msra.mxu0 0.0
    %787 = vmatprep.subr.mxu0 0.0
    %788 = vmatpush2.msra.mxu0 0.0
    %789 = vmatprep.subr.mxu0 0.0
    %790 = vmatpush2.msra.mxu0 0.0
    %791 = vmatprep.subr.mxu0 0.0
    %792 = vmatpush2.msra.mxu0 0.0
    %793 = vmatprep.subr.mxu0 0.0
    %794 = vmatpush2.msra.mxu0 0.0
    %795 = vmatprep.subr.mxu0 0.0
    %796 = vmatpush2.msra.mxu0 0.0
    %797 = vmatprep.subr.mxu0 0.0
    %798 = vmatpush2.msra.mxu0 0.0
    %799 = vmatprep.subr.mxu0 0.0
    %800 = vmatpush2.msra.mxu0 0.0
    %801 = vmatprep.subr.mxu0 0.0
    %802 = vmatpush2.msra.mxu0 0.0
    %803 = vmatprep.subr.mxu0 0.0
    %804 = vmatpush2.msra.mxu0 0.0
    %805 = vmatprep.mubr.f32.mxu0 0.0
    %806 = vmatmul.mubr.f32.gmra.mxu0 %v640
    %v807 = vpop.f32.mrf.mxu0
    %v808 = vadd.f32 %v739, %v807
    %v809 = vpop.f32.mrf.mxu0
    %810 = vmatprep.mubr.f32.mxu0 0.0
    %811 = vmatmul.mubr.f32.gmra.mxu0 %v645
    %v812 = vpop.f32.mrf.mxu0
    %v813 = vadd.f32 %v739, %v812
    %v814 = vpop.f32.mrf.mxu0
    %815 = vmatprep.mubr.f32.mxu0 0.0
    %816 = vmatmul.mubr.f32.gmra.mxu0 %v650
    %v817 = vpop.f32.mrf.mxu0
    %v818 = vadd.f32 %v739, %v817
    %v819 = vpop.f32.mrf.mxu0
    %820 = vmatprep.mubr.f32.mxu0 0.0
    %821 = vmatmul.mubr.f32.gmra.mxu0 %v655
    %v822 = vpop.f32.mrf.mxu0
    %v823 = vadd.f32 %v739, %v822
    %v824 = vpop.f32.mrf.mxu0
    %825 = vmatprep.mubr.f32.mxu0 0.0
    %826 = vmatmul.mubr.f32.gmra.mxu0 %v660
    %v827 = vpop.f32.mrf.mxu0
    %v828 = vadd.f32 %v739, %v827
    %v829 = vpop.f32.mrf.mxu0
    %830 = vmatprep.mubr.f32.mxu0 0.0
    %831 = vmatmul.mubr.f32.gmra.mxu0 %v665
    %v832 = vpop.f32.mrf.mxu0
    %v833 = vadd.f32 %v739, %v832
    %v834 = vpop.f32.mrf.mxu0
    %835 = vmatprep.mubr.f32.mxu0 0.0
    %836 = vmatmul.mubr.f32.gmra.mxu0 %v670
    %v837 = vpop.f32.mrf.mxu0
    %v838 = vadd.f32 %v739, %v837
    %v839 = vpop.f32.mrf.mxu0
    %840 = vmatprep.mubr.f32.mxu0 0.0
    %841 = vmatmul.mubr.f32.gmra.mxu0 %v675
    %v842 = vpop.f32.mrf.mxu0
    %v843 = vadd.f32 %v739, %v842
    %v844 = vpop.f32.mrf.mxu0
    %845 = vmatprep.mubr.f32.mxu0 0.0
    %846 = vmatmul.mubr.f32.gmra.mxu0 %v680
    %v847 = vpop.f32.mrf.mxu0
    %v848 = vadd.f32 %v739, %v847
    %v849 = vpop.f32.mrf.mxu0
    %850 = vmatprep.mubr.f32.mxu0 0.0
    %851 = vmatmul.mubr.f32.gmra.mxu0 %v685
    %v852 = vpop.f32.mrf.mxu0
    %v853 = vadd.f32 %v739, %v852
    %v854 = vpop.f32.mrf.mxu0
    %855 = vmatprep.mubr.f32.mxu0 0.0
    %856 = vmatmul.mubr.f32.gmra.mxu0 %v690
    %v857 = vpop.f32.mrf.mxu0
    %v858 = vadd.f32 %v739, %v857
    %v859 = vpop.f32.mrf.mxu0
    %860 = vmatprep.mubr.f32.mxu0 0.0
    %861 = vmatmul.mubr.f32.gmra.mxu0 %v695
    %v862 = vpop.f32.mrf.mxu0
    %v863 = vadd.f32 %v739, %v862
    %v864 = vpop.f32.mrf.mxu0
    %865 = vmatprep.mubr.f32.mxu0 0.0
    %866 = vmatmul.mubr.f32.gmra.mxu0 %v700
    %v867 = vpop.f32.mrf.mxu0
    %v868 = vadd.f32 %v739, %v867
    %v869 = vpop.f32.mrf.mxu0
    %870 = vmatprep.mubr.f32.mxu0 0.0
    %871 = vmatmul.mubr.f32.gmra.mxu0 %v705
    %v872 = vpop.f32.mrf.mxu0
    %v873 = vadd.f32 %v739, %v872
    %v874 = vpop.f32.mrf.mxu0
    %875 = vmatprep.mubr.f32.mxu0 0.0
    %876 = vmatmul.mubr.f32.gmra.mxu0 %v710
    %v877 = vpop.f32.mrf.mxu0
    %v878 = vadd.f32 %v739, %v877
    %v879 = vpop.f32.mrf.mxu0
    %880 = vmatprep.mubr.f32.mxu0 0.0
    %881 = vmatmul.mubr.f32.gmra.mxu0 %v715
    %v882 = vpop.f32.mrf.mxu0
    %v883 = vadd.f32 %v739, %v882
    %v884 = vpop.f32.mrf.mxu0
    %885 = vdwg.mxu0
    %v886 = vadd.f32 %v534, %v808
    %v887 = vadd.f32 %v535, %v813
    %v888 = vadd.f32 %v536, %v818
    %v889 = vadd.f32 %v537, %v823
    %v890 = vadd.f32 %v538, %v828
    %v891 = vadd.f32 %v539, %v833
    %v892 = vadd.f32 %v540, %v838
    %v893 = vadd.f32 %v541, %v843
    %v894 = vadd.f32 %v542, %v848
    %v895 = vadd.f32 %v543, %v853
    %v896 = vadd.f32 %v544, %v858
    %v897 = vadd.f32 %v545, %v863
    %v898 = vadd.f32 %v546, %v868
    %v899 = vadd.f32 %v547, %v873
    %v900 = vadd.f32 %v548, %v878
    %v901 = vadd.f32 %v549, %v883
    %v902 = vmin.f32 %v886, 0.0
    %v903 = vmin.f32 %v887, 0.0
    %v904 = vmin.f32 %v888, 0.0
    %v905 = vmin.f32 %v889, 0.0
    %v906 = vmin.f32 %v890, 0.0
    %v907 = vmin.f32 %v891, 0.0
    %v908 = vmin.f32 %v892, 0.0
    %v909 = vmin.f32 %v893, 0.0
    %v910 = vmin.f32 %v894, 0.0
    %v911 = vmin.f32 %v895, 0.0
    %v912 = vmin.f32 %v896, 0.0
    %v913 = vmin.f32 %v897, 0.0
    %v914 = vmin.f32 %v898, 0.0
    %v915 = vmin.f32 %v899, 0.0
    %v916 = vmin.f32 %v900, 0.0
    %v917 = vmin.f32 %v901, 0.0
    %v918 = vmul.f32 %v902, 1.442695
    %v919 = vpow.pop %v918
    %v920 = vmul.f32 %v903, 1.442695
    %v921 = vpow.pop %v920
    %v922 = vmul.f32 %v904, 1.442695
    %v923 = vpow.pop %v922
    %v924 = vmul.f32 %v905, 1.442695
    %v925 = vpow.pop %v924
    %v926 = vmul.f32 %v906, 1.442695
    %v927 = vpow.pop %v926
    %v928 = vmul.f32 %v907, 1.442695
    %v929 = vpow.pop %v928
    %v930 = vmul.f32 %v908, 1.442695
    %v931 = vpow.pop %v930
    %v932 = vmul.f32 %v909, 1.442695
    %v933 = vpow.pop %v932
    %v934 = vmul.f32 %v910, 1.442695
    %v935 = vpow.pop %v934
    %v936 = vmul.f32 %v911, 1.442695
    %v937 = vpow.pop %v936
    %v938 = vmul.f32 %v912, 1.442695
    %v939 = vpow.pop %v938
    %v940 = vmul.f32 %v913, 1.442695
    %v941 = vpow.pop %v940
    %v942 = vmul.f32 %v914, 1.442695
    %v943 = vpow.pop %v942
    %v944 = vmul.f32 %v915, 1.442695
    %v945 = vpow.pop %v944
    %v946 = vmul.f32 %v916, 1.442695
    %v947 = vpow.pop %v946
    %v948 = vmul.f32 %v917, 1.442695
    %v949 = vpow.pop %v948
    %v950 = vsub.f32 %v919, 1.0
    %v951 = vsub.f32 %v921, 1.0
    %v952 = vsub.f32 %v923, 1.0
    %v953 = vsub.f32 %v925, 1.0
    %v954 = vsub.f32 %v927, 1.0
    %v955 = vsub.f32 %v929, 1.0
    %v956 = vsub.f32 %v931, 1.0
    %v957 = vsub.f32 %v933, 1.0
    %v958 = vsub.f32 %v935, 1.0
    %v959 = vsub.f32 %v937, 1.0
    %v960 = vsub.f32 %v939, 1.0
    %v961 = vsub.f32 %v941, 1.0
    %v962 = vsub.f32 %v943, 1.0
    %v963 = vsub.f32 %v945, 1.0
    %v964 = vsub.f32 %v947, 1.0
    %v965 = vsub.f32 %v949, 1.0
    %vm966 = vcmp.gt.f32.partialorder %v886, 0.0
    %vm967 = vcmp.gt.f32.partialorder %v887, 0.0
    %vm968 = vcmp.gt.f32.partialorder %v888, 0.0
    %vm969 = vcmp.gt.f32.partialorder %v889, 0.0
    %vm970 = vcmp.gt.f32.partialorder %v890, 0.0
    %vm971 = vcmp.gt.f32.partialorder %v891, 0.0
    %vm972 = vcmp.gt.f32.partialorder %v892, 0.0
    %vm973 = vcmp.gt.f32.partialorder %v893, 0.0
    %vm974 = vcmp.gt.f32.partialorder %v894, 0.0
    %vm975 = vcmp.gt.f32.partialorder %v895, 0.0
    %vm976 = vcmp.gt.f32.partialorder %v896, 0.0
    %vm977 = vcmp.gt.f32.partialorder %v897, 0.0
    %vm978 = vcmp.gt.f32.partialorder %v898, 0.0
    %vm979 = vcmp.gt.f32.partialorder %v899, 0.0
    %vm980 = vcmp.gt.f32.partialorder %v900, 0.0
    %vm981 = vcmp.gt.f32.partialorder %v901, 0.0
    %v982 = vsel %vm966, %v886, %v950
    %v983 = vsel %vm967, %v887, %v951
    %v984 = vsel %vm968, %v888, %v952
    %v985 = vsel %vm969, %v889, %v953
    %v986 = vsel %vm970, %v890, %v954
    %v987 = vsel %vm971, %v891, %v955
    %v988 = vsel %vm972, %v892, %v956
    %v989 = vsel %vm973, %v893, %v957
    %v990 = vsel %vm974, %v894, %v958
    %v991 = vsel %vm975, %v895, %v959
    %v992 = vsel %vm976, %v896, %v960
    %v993 = vsel %vm977, %v897, %v961
    %v994 = vsel %vm978, %v898, %v962
    %v995 = vsel %vm979, %v899, %v963
    %v996 = vsel %vm980, %v900, %v964
    %v997 = vsel %vm981, %v901, %v965
    %v998 = vld [vmem:[%s10] sm:$0xff]
    %v999 = vld [vmem:[%s10 + $0x8] sm:$0xff]
    %v1000 = vld [vmem:[%s10 + $0x10] sm:$0xff]
    %v1001 = vld [vmem:[%s10 + $0x18] sm:$0xff]
    %v1002 = vld [vmem:[%s10 + $0x20] sm:$0xff]
    %v1003 = vld [vmem:[%s10 + $0x28] sm:$0xff]
    %v1004 = vld [vmem:[%s10 + $0x30] sm:$0xff]
    %v1005 = vld [vmem:[%s10 + $0x38] sm:$0xff]
    %v1006 = vld [vmem:[%s10 + $0x40] sm:$0xff]
    %v1007 = vld [vmem:[%s10 + $0x48] sm:$0xff]
    %v1008 = vld [vmem:[%s10 + $0x50] sm:$0xff]
    %v1009 = vld [vmem:[%s10 + $0x58] sm:$0xff]
    %v1010 = vld [vmem:[%s10 + $0x60] sm:$0xff]
    %v1011 = vld [vmem:[%s10 + $0x68] sm:$0xff]
    %v1012 = vld [vmem:[%s10 + $0x70] sm:$0xff]
    %v1013 = vld [vmem:[%s10 + $0x78] sm:$0xff]
    %v1014 = vld [vmem:[#allocation4] sm:$0x1]
    %v1016 = vlaneseq
    %v1017 = vshrl.u32 %v1016, 7
    %v1018 = vsub.s32 0, %v1017
    %v1019 = vrot.slane %v1014, %v1018
    %1021 = vmatprep.subr.mxu0 0.0
    %1022 = vmatpush1.msra.mxu0 %v1013
    %1023 = vmatprep.subr.mxu0 0.0
    %1024 = vmatpush1.msra.mxu0 %v1012
    %1025 = vmatprep.subr.mxu0 0.0
    %1026 = vmatpush1.msra.mxu0 %v1011
    %1027 = vmatprep.subr.mxu0 0.0
    %1028 = vmatpush1.msra.mxu0 %v1010
    %1029 = vmatprep.subr.mxu0 0.0
    %1030 = vmatpush1.msra.mxu0 %v1009
    %1031 = vmatprep.subr.mxu0 0.0
    %1032 = vmatpush1.msra.mxu0 %v1008
    %1033 = vmatprep.subr.mxu0 0.0
    %1034 = vmatpush1.msra.mxu0 %v1007
    %1035 = vmatprep.subr.mxu0 0.0
    %1036 = vmatpush1.msra.mxu0 %v1006
    %1037 = vmatprep.subr.mxu0 0.0
    %1038 = vmatpush1.msra.mxu0 %v1005
    %1039 = vmatprep.subr.mxu0 0.0
    %1040 = vmatpush1.msra.mxu0 %v1004
    %1041 = vmatprep.subr.mxu0 0.0
    %1042 = vmatpush1.msra.mxu0 %v1003
    %1043 = vmatprep.subr.mxu0 0.0
    %1044 = vmatpush1.msra.mxu0 %v1002
    %1045 = vmatprep.subr.mxu0 0.0
    %1046 = vmatpush1.msra.mxu0 %v1001
    %1047 = vmatprep.subr.mxu0 0.0
    %1048 = vmatpush1.msra.mxu0 %v1000
    %1049 = vmatprep.subr.mxu0 0.0
    %1050 = vmatpush1.msra.mxu0 %v999
    %1051 = vmatprep.subr.mxu0 0.0
    %1052 = vmatpush1.msra.mxu0 %v998
    %1053 = vmatprep.subr.mxu0 0.0
    %1054 = vmatpush2.msra.mxu0 0.0
    %1055 = vmatprep.subr.mxu0 0.0
    %1056 = vmatpush2.msra.mxu0 0.0
    %1057 = vmatprep.subr.mxu0 0.0
    %1058 = vmatpush2.msra.mxu0 0.0
    %1059 = vmatprep.subr.mxu0 0.0
    %1060 = vmatpush2.msra.mxu0 0.0
    %1061 = vmatprep.subr.mxu0 0.0
    %1062 = vmatpush2.msra.mxu0 0.0
    %1063 = vmatprep.subr.mxu0 0.0
    %1064 = vmatpush2.msra.mxu0 0.0
    %1065 = vmatprep.subr.mxu0 0.0
    %1066 = vmatpush2.msra.mxu0 0.0
    %1067 = vmatprep.subr.mxu0 0.0
    %1068 = vmatpush2.msra.mxu0 0.0
    %1069 = vmatprep.subr.mxu0 0.0
    %1070 = vmatpush2.msra.mxu0 0.0
    %1071 = vmatprep.subr.mxu0 0.0
    %1072 = vmatpush2.msra.mxu0 0.0
    %1073 = vmatprep.subr.mxu0 0.0
    %1074 = vmatpush2.msra.mxu0 0.0
    %1075 = vmatprep.subr.mxu0 0.0
    %1076 = vmatpush2.msra.mxu0 0.0
    %1077 = vmatprep.subr.mxu0 0.0
    %1078 = vmatpush2.msra.mxu0 0.0
    %1079 = vmatprep.subr.mxu0 0.0
    %1080 = vmatpush2.msra.mxu0 0.0
    %1081 = vmatprep.subr.mxu0 0.0
    %1082 = vmatpush2.msra.mxu0 0.0
    %1083 = vmatprep.subr.mxu0 0.0
    %1084 = vmatpush2.msra.mxu0 0.0
    %1085 = vmatprep.mubr.f32.mxu0 0.0
    %1086 = vmatmul.mubr.f32.gmra.mxu0 %v982
    %v1087 = vpop.f32.mrf.mxu0
    %v1088 = vadd.f32 %v1019, %v1087
    %v1089 = vpop.f32.mrf.mxu0
    %1090 = vmatprep.mubr.f32.mxu0 0.0
    %1091 = vmatmul.mubr.f32.gmra.mxu0 %v983
    %v1092 = vpop.f32.mrf.mxu0
    %v1093 = vadd.f32 %v1019, %v1092
    %v1094 = vpop.f32.mrf.mxu0
    %1095 = vmatprep.mubr.f32.mxu0 0.0
    %1096 = vmatmul.mubr.f32.gmra.mxu0 %v984
    %v1097 = vpop.f32.mrf.mxu0
    %v1098 = vadd.f32 %v1019, %v1097
    %v1099 = vpop.f32.mrf.mxu0
    %1100 = vmatprep.mubr.f32.mxu0 0.0
    %1101 = vmatmul.mubr.f32.gmra.mxu0 %v985
    %v1102 = vpop.f32.mrf.mxu0
    %v1103 = vadd.f32 %v1019, %v1102
    %v1104 = vpop.f32.mrf.mxu0
    %1105 = vmatprep.mubr.f32.mxu0 0.0
    %1106 = vmatmul.mubr.f32.gmra.mxu0 %v986
    %v1107 = vpop.f32.mrf.mxu0
    %v1108 = vadd.f32 %v1019, %v1107
    %v1109 = vpop.f32.mrf.mxu0
    %1110 = vmatprep.mubr.f32.mxu0 0.0
    %1111 = vmatmul.mubr.f32.gmra.mxu0 %v987
    %v1112 = vpop.f32.mrf.mxu0
    %v1113 = vadd.f32 %v1019, %v1112
    %v1114 = vpop.f32.mrf.mxu0
    %1115 = vmatprep.mubr.f32.mxu0 0.0
    %1116 = vmatmul.mubr.f32.gmra.mxu0 %v988
    %v1117 = vpop.f32.mrf.mxu0
    %v1118 = vadd.f32 %v1019, %v1117
    %v1119 = vpop.f32.mrf.mxu0
    %1120 = vmatprep.mubr.f32.mxu0 0.0
    %1121 = vmatmul.mubr.f32.gmra.mxu0 %v989
    %v1122 = vpop.f32.mrf.mxu0
    %v1123 = vadd.f32 %v1019, %v1122
    %v1124 = vpop.f32.mrf.mxu0
    %1125 = vmatprep.mubr.f32.mxu0 0.0
    %1126 = vmatmul.mubr.f32.gmra.mxu0 %v990
    %v1127 = vpop.f32.mrf.mxu0
    %v1128 = vadd.f32 %v1019, %v1127
    %v1129 = vpop.f32.mrf.mxu0
    %1130 = vmatprep.mubr.f32.mxu0 0.0
    %1131 = vmatmul.mubr.f32.gmra.mxu0 %v991
    %v1132 = vpop.f32.mrf.mxu0
    %v1133 = vadd.f32 %v1019, %v1132
    %v1134 = vpop.f32.mrf.mxu0
    %1135 = vmatprep.mubr.f32.mxu0 0.0
    %1136 = vmatmul.mubr.f32.gmra.mxu0 %v992
    %v1137 = vpop.f32.mrf.mxu0
    %v1138 = vadd.f32 %v1019, %v1137
    %v1139 = vpop.f32.mrf.mxu0
    %1140 = vmatprep.mubr.f32.mxu0 0.0
    %1141 = vmatmul.mubr.f32.gmra.mxu0 %v993
    %v1142 = vpop.f32.mrf.mxu0
    %v1143 = vadd.f32 %v1019, %v1142
    %v1144 = vpop.f32.mrf.mxu0
    %1145 = vmatprep.mubr.f32.mxu0 0.0
    %1146 = vmatmul.mubr.f32.gmra.mxu0 %v994
    %v1147 = vpop.f32.mrf.mxu0
    %v1148 = vadd.f32 %v1019, %v1147
    %v1149 = vpop.f32.mrf.mxu0
    %1150 = vmatprep.mubr.f32.mxu0 0.0
    %1151 = vmatmul.mubr.f32.gmra.mxu0 %v995
    %v1152 = vpop.f32.mrf.mxu0
    %v1153 = vadd.f32 %v1019, %v1152
    %v1154 = vpop.f32.mrf.mxu0
    %1155 = vmatprep.mubr.f32.mxu0 0.0
    %1156 = vmatmul.mubr.f32.gmra.mxu0 %v996
    %v1157 = vpop.f32.mrf.mxu0
    %v1158 = vadd.f32 %v1019, %v1157
    %v1159 = vpop.f32.mrf.mxu0
    %1160 = vmatprep.mubr.f32.mxu0 0.0
    %1161 = vmatmul.mubr.f32.gmra.mxu0 %v997
    %v1162 = vpop.f32.mrf.mxu0
    %v1163 = vadd.f32 %v1019, %v1162
    %v1164 = vpop.f32.mrf.mxu0
    %1165 = vdwg.mxu0
    %v1166 = vld [vmem:[%s12] sm:$0xff]
    %v1167 = vld [vmem:[%s12 + $0x8] sm:$0xff]
    %v1168 = vld [vmem:[%s12 + $0x10] sm:$0xff]
    %v1169 = vld [vmem:[%s12 + $0x18] sm:$0xff]
    %v1170 = vld [vmem:[%s12 + $0x20] sm:$0xff]
    %v1171 = vld [vmem:[%s12 + $0x28] sm:$0xff]
    %v1172 = vld [vmem:[%s12 + $0x30] sm:$0xff]
    %v1173 = vld [vmem:[%s12 + $0x38] sm:$0xff]
    %v1174 = vld [vmem:[%s12 + $0x40] sm:$0xff]
    %v1175 = vld [vmem:[%s12 + $0x48] sm:$0xff]
    %v1176 = vld [vmem:[%s12 + $0x50] sm:$0xff]
    %v1177 = vld [vmem:[%s12 + $0x58] sm:$0xff]
    %v1178 = vld [vmem:[%s12 + $0x60] sm:$0xff]
    %v1179 = vld [vmem:[%s12 + $0x68] sm:$0xff]
    %v1180 = vld [vmem:[%s12 + $0x70] sm:$0xff]
    %v1181 = vld [vmem:[%s12 + $0x78] sm:$0xff]
    %v1182 = vld [vmem:[#allocation6] sm:$0x1]
    %v1184 = vlaneseq
    %v1185 = vshrl.u32 %v1184, 7
    %v1186 = vsub.s32 0, %v1185
    %v1187 = vrot.slane %v1182, %v1186
    %1189 = vmatprep.subr.mxu0 0.0
    %1190 = vmatpush1.msra.mxu0 %v1181
    %1191 = vmatprep.subr.mxu0 0.0
    %1192 = vmatpush1.msra.mxu0 %v1180
    %1193 = vmatprep.subr.mxu0 0.0
    %1194 = vmatpush1.msra.mxu0 %v1179
    %1195 = vmatprep.subr.mxu0 0.0
    %1196 = vmatpush1.msra.mxu0 %v1178
    %1197 = vmatprep.subr.mxu0 0.0
    %1198 = vmatpush1.msra.mxu0 %v1177
    %1199 = vmatprep.subr.mxu0 0.0
    %1200 = vmatpush1.msra.mxu0 %v1176
    %1201 = vmatprep.subr.mxu0 0.0
    %1202 = vmatpush1.msra.mxu0 %v1175
    %1203 = vmatprep.subr.mxu0 0.0
    %1204 = vmatpush1.msra.mxu0 %v1174
    %1205 = vmatprep.subr.mxu0 0.0
    %1206 = vmatpush1.msra.mxu0 %v1173
    %1207 = vmatprep.subr.mxu0 0.0
    %1208 = vmatpush1.msra.mxu0 %v1172
    %1209 = vmatprep.subr.mxu0 0.0
    %1210 = vmatpush1.msra.mxu0 %v1171
    %1211 = vmatprep.subr.mxu0 0.0
    %1212 = vmatpush1.msra.mxu0 %v1170
    %1213 = vmatprep.subr.mxu0 0.0
    %1214 = vmatpush1.msra.mxu0 %v1169
    %1215 = vmatprep.subr.mxu0 0.0
    %1216 = vmatpush1.msra.mxu0 %v1168
    %1217 = vmatprep.subr.mxu0 0.0
    %1218 = vmatpush1.msra.mxu0 %v1167
    %1219 = vmatprep.subr.mxu0 0.0
    %1220 = vmatpush1.msra.mxu0 %v1166
    %1221 = vmatprep.subr.mxu0 0.0
    %1222 = vmatpush2.msra.mxu0 0.0
    %1223 = vmatprep.subr.mxu0 0.0
    %1224 = vmatpush2.msra.mxu0 0.0
    %1225 = vmatprep.subr.mxu0 0.0
    %1226 = vmatpush2.msra.mxu0 0.0
    %1227 = vmatprep.subr.mxu0 0.0
    %1228 = vmatpush2.msra.mxu0 0.0
    %1229 = vmatprep.subr.mxu0 0.0
    %1230 = vmatpush2.msra.mxu0 0.0
    %1231 = vmatprep.subr.mxu0 0.0
    %1232 = vmatpush2.msra.mxu0 0.0
    %1233 = vmatprep.subr.mxu0 0.0
    %1234 = vmatpush2.msra.mxu0 0.0
    %1235 = vmatprep.subr.mxu0 0.0
    %1236 = vmatpush2.msra.mxu0 0.0
    %1237 = vmatprep.subr.mxu0 0.0
    %1238 = vmatpush2.msra.mxu0 0.0
    %1239 = vmatprep.subr.mxu0 0.0
    %1240 = vmatpush2.msra.mxu0 0.0
    %1241 = vmatprep.subr.mxu0 0.0
    %1242 = vmatpush2.msra.mxu0 0.0
    %1243 = vmatprep.subr.mxu0 0.0
    %1244 = vmatpush2.msra.mxu0 0.0
    %1245 = vmatprep.subr.mxu0 0.0
    %1246 = vmatpush2.msra.mxu0 0.0
    %1247 = vmatprep.subr.mxu0 0.0
    %1248 = vmatpush2.msra.mxu0 0.0
    %1249 = vmatprep.subr.mxu0 0.0
    %1250 = vmatpush2.msra.mxu0 0.0
    %1251 = vmatprep.subr.mxu0 0.0
    %1252 = vmatpush2.msra.mxu0 0.0
    %1253 = vmatprep.mubr.f32.mxu0 0.0
    %1254 = vmatmul.mubr.f32.gmra.mxu0 %v1088
    %v1255 = vpop.f32.mrf.mxu0
    %v1256 = vadd.f32 %v1187, %v1255
    %v1257 = vpop.f32.mrf.mxu0
    %1258 = vmatprep.mubr.f32.mxu0 0.0
    %1259 = vmatmul.mubr.f32.gmra.mxu0 %v1093
    %v1260 = vpop.f32.mrf.mxu0
    %v1261 = vadd.f32 %v1187, %v1260
    %v1262 = vpop.f32.mrf.mxu0
    %1263 = vmatprep.mubr.f32.mxu0 0.0
    %1264 = vmatmul.mubr.f32.gmra.mxu0 %v1098
    %v1265 = vpop.f32.mrf.mxu0
    %v1266 = vadd.f32 %v1187, %v1265
    %v1267 = vpop.f32.mrf.mxu0
    %1268 = vmatprep.mubr.f32.mxu0 0.0
    %1269 = vmatmul.mubr.f32.gmra.mxu0 %v1103
    %v1270 = vpop.f32.mrf.mxu0
    %v1271 = vadd.f32 %v1187, %v1270
    %v1272 = vpop.f32.mrf.mxu0
    %1273 = vmatprep.mubr.f32.mxu0 0.0
    %1274 = vmatmul.mubr.f32.gmra.mxu0 %v1108
    %v1275 = vpop.f32.mrf.mxu0
    %v1276 = vadd.f32 %v1187, %v1275
    %v1277 = vpop.f32.mrf.mxu0
    %1278 = vmatprep.mubr.f32.mxu0 0.0
    %1279 = vmatmul.mubr.f32.gmra.mxu0 %v1113
    %v1280 = vpop.f32.mrf.mxu0
    %v1281 = vadd.f32 %v1187, %v1280
    %v1282 = vpop.f32.mrf.mxu0
    %1283 = vmatprep.mubr.f32.mxu0 0.0
    %1284 = vmatmul.mubr.f32.gmra.mxu0 %v1118
    %v1285 = vpop.f32.mrf.mxu0
    %v1286 = vadd.f32 %v1187, %v1285
    %v1287 = vpop.f32.mrf.mxu0
    %1288 = vmatprep.mubr.f32.mxu0 0.0
    %1289 = vmatmul.mubr.f32.gmra.mxu0 %v1123
    %v1290 = vpop.f32.mrf.mxu0
    %v1291 = vadd.f32 %v1187, %v1290
    %v1292 = vpop.f32.mrf.mxu0
    %1293 = vmatprep.mubr.f32.mxu0 0.0
    %1294 = vmatmul.mubr.f32.gmra.mxu0 %v1128
    %v1295 = vpop.f32.mrf.mxu0
    %v1296 = vadd.f32 %v1187, %v1295
    %v1297 = vpop.f32.mrf.mxu0
    %1298 = vmatprep.mubr.f32.mxu0 0.0
    %1299 = vmatmul.mubr.f32.gmra.mxu0 %v1133
    %v1300 = vpop.f32.mrf.mxu0
    %v1301 = vadd.f32 %v1187, %v1300
    %v1302 = vpop.f32.mrf.mxu0
    %1303 = vmatprep.mubr.f32.mxu0 0.0
    %1304 = vmatmul.mubr.f32.gmra.mxu0 %v1138
    %v1305 = vpop.f32.mrf.mxu0
    %v1306 = vadd.f32 %v1187, %v1305
    %v1307 = vpop.f32.mrf.mxu0
    %1308 = vmatprep.mubr.f32.mxu0 0.0
    %1309 = vmatmul.mubr.f32.gmra.mxu0 %v1143
    %v1310 = vpop.f32.mrf.mxu0
    %v1311 = vadd.f32 %v1187, %v1310
    %v1312 = vpop.f32.mrf.mxu0
    %1313 = vmatprep.mubr.f32.mxu0 0.0
    %1314 = vmatmul.mubr.f32.gmra.mxu0 %v1148
    %v1315 = vpop.f32.mrf.mxu0
    %v1316 = vadd.f32 %v1187, %v1315
    %v1317 = vpop.f32.mrf.mxu0
    %1318 = vmatprep.mubr.f32.mxu0 0.0
    %1319 = vmatmul.mubr.f32.gmra.mxu0 %v1153
    %v1320 = vpop.f32.mrf.mxu0
    %v1321 = vadd.f32 %v1187, %v1320
    %v1322 = vpop.f32.mrf.mxu0
    %1323 = vmatprep.mubr.f32.mxu0 0.0
    %1324 = vmatmul.mubr.f32.gmra.mxu0 %v1158
    %v1325 = vpop.f32.mrf.mxu0
    %v1326 = vadd.f32 %v1187, %v1325
    %v1327 = vpop.f32.mrf.mxu0
    %1328 = vmatprep.mubr.f32.mxu0 0.0
    %1329 = vmatmul.mubr.f32.gmra.mxu0 %v1163
    %v1330 = vpop.f32.mrf.mxu0
    %v1331 = vadd.f32 %v1187, %v1330
    %v1332 = vpop.f32.mrf.mxu0
    %1333 = vdwg.mxu0
    %v1334 = vadd.f32 %v982, %v1256
    %v1335 = vadd.f32 %v983, %v1261
    %v1336 = vadd.f32 %v984, %v1266
    %v1337 = vadd.f32 %v985, %v1271
    %v1338 = vadd.f32 %v986, %v1276
    %v1339 = vadd.f32 %v987, %v1281
    %v1340 = vadd.f32 %v988, %v1286
    %v1341 = vadd.f32 %v989, %v1291
    %v1342 = vadd.f32 %v990, %v1296
    %v1343 = vadd.f32 %v991, %v1301
    %v1344 = vadd.f32 %v992, %v1306
    %v1345 = vadd.f32 %v993, %v1311
    %v1346 = vadd.f32 %v994, %v1316
    %v1347 = vadd.f32 %v995, %v1321
    %v1348 = vadd.f32 %v996, %v1326
    %v1349 = vadd.f32 %v997, %v1331
    %v1350 = vmin.f32 %v1334, 0.0
    %v1351 = vmin.f32 %v1335, 0.0
    %v1352 = vmin.f32 %v1336, 0.0
    %v1353 = vmin.f32 %v1337, 0.0
    %v1354 = vmin.f32 %v1338, 0.0
    %v1355 = vmin.f32 %v1339, 0.0
    %v1356 = vmin.f32 %v1340, 0.0
    %v1357 = vmin.f32 %v1341, 0.0
    %v1358 = vmin.f32 %v1342, 0.0
    %v1359 = vmin.f32 %v1343, 0.0
    %v1360 = vmin.f32 %v1344, 0.0
    %v1361 = vmin.f32 %v1345, 0.0
    %v1362 = vmin.f32 %v1346, 0.0
    %v1363 = vmin.f32 %v1347, 0.0
    %v1364 = vmin.f32 %v1348, 0.0
    %v1365 = vmin.f32 %v1349, 0.0
    %v1366 = vmul.f32 %v1350, 1.442695
    %v1367 = vpow.pop %v1366
    %v1368 = vmul.f32 %v1351, 1.442695
    %v1369 = vpow.pop %v1368
    %v1370 = vmul.f32 %v1352, 1.442695
    %v1371 = vpow.pop %v1370
    %v1372 = vmul.f32 %v1353, 1.442695
    %v1373 = vpow.pop %v1372
    %v1374 = vmul.f32 %v1354, 1.442695
    %v1375 = vpow.pop %v1374
    %v1376 = vmul.f32 %v1355, 1.442695
    %v1377 = vpow.pop %v1376
    %v1378 = vmul.f32 %v1356, 1.442695
    %v1379 = vpow.pop %v1378
    %v1380 = vmul.f32 %v1357, 1.442695
    %v1381 = vpow.pop %v1380
    %v1382 = vmul.f32 %v1358, 1.442695
    %v1383 = vpow.pop %v1382
    %v1384 = vmul.f32 %v1359, 1.442695
    %v1385 = vpow.pop %v1384
    %v1386 = vmul.f32 %v1360, 1.442695
    %v1387 = vpow.pop %v1386
    %v1388 = vmul.f32 %v1361, 1.442695
    %v1389 = vpow.pop %v1388
    %v1390 = vmul.f32 %v1362, 1.442695
    %v1391 = vpow.pop %v1390
    %v1392 = vmul.f32 %v1363, 1.442695
    %v1393 = vpow.pop %v1392
    %v1394 = vmul.f32 %v1364, 1.442695
    %v1395 = vpow.pop %v1394
    %v1396 = vmul.f32 %v1365, 1.442695
    %v1397 = vpow.pop %v1396
    %v1398 = vsub.f32 %v1367, 1.0
    %v1399 = vsub.f32 %v1369, 1.0
    %v1400 = vsub.f32 %v1371, 1.0
    %v1401 = vsub.f32 %v1373, 1.0
    %v1402 = vsub.f32 %v1375, 1.0
    %v1403 = vsub.f32 %v1377, 1.0
    %v1404 = vsub.f32 %v1379, 1.0
    %v1405 = vsub.f32 %v1381, 1.0
    %v1406 = vsub.f32 %v1383, 1.0
    %v1407 = vsub.f32 %v1385, 1.0
    %v1408 = vsub.f32 %v1387, 1.0
    %v1409 = vsub.f32 %v1389, 1.0
    %v1410 = vsub.f32 %v1391, 1.0
    %v1411 = vsub.f32 %v1393, 1.0
    %v1412 = vsub.f32 %v1395, 1.0
    %v1413 = vsub.f32 %v1397, 1.0
    %vm1414 = vcmp.gt.f32.partialorder %v1334, 0.0
    %vm1415 = vcmp.gt.f32.partialorder %v1335, 0.0
    %vm1416 = vcmp.gt.f32.partialorder %v1336, 0.0
    %vm1417 = vcmp.gt.f32.partialorder %v1337, 0.0
    %vm1418 = vcmp.gt.f32.partialorder %v1338, 0.0
    %vm1419 = vcmp.gt.f32.partialorder %v1339, 0.0
    %vm1420 = vcmp.gt.f32.partialorder %v1340, 0.0
    %vm1421 = vcmp.gt.f32.partialorder %v1341, 0.0
    %vm1422 = vcmp.gt.f32.partialorder %v1342, 0.0
    %vm1423 = vcmp.gt.f32.partialorder %v1343, 0.0
    %vm1424 = vcmp.gt.f32.partialorder %v1344, 0.0
    %vm1425 = vcmp.gt.f32.partialorder %v1345, 0.0
    %vm1426 = vcmp.gt.f32.partialorder %v1346, 0.0
    %vm1427 = vcmp.gt.f32.partialorder %v1347, 0.0
    %vm1428 = vcmp.gt.f32.partialorder %v1348, 0.0
    %vm1429 = vcmp.gt.f32.partialorder %v1349, 0.0
    %v1430 = vsel %vm1414, %v1334, %v1398
    %v1431 = vsel %vm1415, %v1335, %v1399
    %v1432 = vsel %vm1416, %v1336, %v1400
    %v1433 = vsel %vm1417, %v1337, %v1401
    %v1434 = vsel %vm1418, %v1338, %v1402
    %v1435 = vsel %vm1419, %v1339, %v1403
    %v1436 = vsel %vm1420, %v1340, %v1404
    %v1437 = vsel %vm1421, %v1341, %v1405
    %v1438 = vsel %vm1422, %v1342, %v1406
    %v1439 = vsel %vm1423, %v1343, %v1407
    %v1440 = vsel %vm1424, %v1344, %v1408
    %v1441 = vsel %vm1425, %v1345, %v1409
    %v1442 = vsel %vm1426, %v1346, %v1410
    %v1443 = vsel %vm1427, %v1347, %v1411
    %v1444 = vsel %vm1428, %v1348, %v1412
    %v1445 = vsel %vm1429, %v1349, %v1413
    %v1446 = vld [vmem:[%s14] sm:$0xff]
    %v1447 = vld [vmem:[%s14 + $0x8] sm:$0xff]
    %v1448 = vld [vmem:[%s14 + $0x10] sm:$0xff]
    %v1449 = vld [vmem:[%s14 + $0x18] sm:$0xff]
    %v1450 = vld [vmem:[%s14 + $0x20] sm:$0xff]
    %v1451 = vld [vmem:[%s14 + $0x28] sm:$0xff]
    %v1452 = vld [vmem:[%s14 + $0x30] sm:$0xff]
    %v1453 = vld [vmem:[%s14 + $0x38] sm:$0xff]
    %v1454 = vld [vmem:[%s14 + $0x40] sm:$0xff]
    %v1455 = vld [vmem:[%s14 + $0x48] sm:$0xff]
    %v1456 = vld [vmem:[%s14 + $0x50] sm:$0xff]
    %v1457 = vld [vmem:[%s14 + $0x58] sm:$0xff]
    %v1458 = vld [vmem:[%s14 + $0x60] sm:$0xff]
    %v1459 = vld [vmem:[%s14 + $0x68] sm:$0xff]
    %v1460 = vld [vmem:[%s14 + $0x70] sm:$0xff]
    %v1461 = vld [vmem:[%s14 + $0x78] sm:$0xff]
    %v1462 = vld [vmem:[#allocation7] sm:$0x1]
    %v1464 = vlaneseq
    %v1465 = vshrl.u32 %v1464, 7
    %v1466 = vsub.s32 0, %v1465
    %v1467 = vrot.slane %v1462, %v1466
    %1469 = vmatprep.subr.mxu0 0.0
    %1470 = vmatpush1.msra.mxu0 %v1461
    %1471 = vmatprep.subr.mxu0 0.0
    %1472 = vmatpush1.msra.mxu0 %v1460
    %1473 = vmatprep.subr.mxu0 0.0
    %1474 = vmatpush1.msra.mxu0 %v1459
    %1475 = vmatprep.subr.mxu0 0.0
    %1476 = vmatpush1.msra.mxu0 %v1458
    %1477 = vmatprep.subr.mxu0 0.0
    %1478 = vmatpush1.msra.mxu0 %v1457
    %1479 = vmatprep.subr.mxu0 0.0
    %1480 = vmatpush1.msra.mxu0 %v1456
    %1481 = vmatprep.subr.mxu0 0.0
    %1482 = vmatpush1.msra.mxu0 %v1455
    %1483 = vmatprep.subr.mxu0 0.0
    %1484 = vmatpush1.msra.mxu0 %v1454
    %1485 = vmatprep.subr.mxu0 0.0
    %1486 = vmatpush1.msra.mxu0 %v1453
    %1487 = vmatprep.subr.mxu0 0.0
    %1488 = vmatpush1.msra.mxu0 %v1452
    %1489 = vmatprep.subr.mxu0 0.0
    %1490 = vmatpush1.msra.mxu0 %v1451
    %1491 = vmatprep.subr.mxu0 0.0
    %1492 = vmatpush1.msra.mxu0 %v1450
    %1493 = vmatprep.subr.mxu0 0.0
    %1494 = vmatpush1.msra.mxu0 %v1449
    %1495 = vmatprep.subr.mxu0 0.0
    %1496 = vmatpush1.msra.mxu0 %v1448
    %1497 = vmatprep.subr.mxu0 0.0
    %1498 = vmatpush1.msra.mxu0 %v1447
    %1499 = vmatprep.subr.mxu0 0.0
    %1500 = vmatpush1.msra.mxu0 %v1446
    %1501 = vmatprep.subr.mxu0 0.0
    %1502 = vmatpush2.msra.mxu0 0.0
    %1503 = vmatprep.subr.mxu0 0.0
    %1504 = vmatpush2.msra.mxu0 0.0
    %1505 = vmatprep.subr.mxu0 0.0
    %1506 = vmatpush2.msra.mxu0 0.0
    %1507 = vmatprep.subr.mxu0 0.0
    %1508 = vmatpush2.msra.mxu0 0.0
    %1509 = vmatprep.subr.mxu0 0.0
    %1510 = vmatpush2.msra.mxu0 0.0
    %1511 = vmatprep.subr.mxu0 0.0
    %1512 = vmatpush2.msra.mxu0 0.0
    %1513 = vmatprep.subr.mxu0 0.0
    %1514 = vmatpush2.msra.mxu0 0.0
    %1515 = vmatprep.subr.mxu0 0.0
    %1516 = vmatpush2.msra.mxu0 0.0
    %1517 = vmatprep.subr.mxu0 0.0
    %1518 = vmatpush2.msra.mxu0 0.0
    %1519 = vmatprep.subr.mxu0 0.0
    %1520 = vmatpush2.msra.mxu0 0.0
    %1521 = vmatprep.subr.mxu0 0.0
    %1522 = vmatpush2.msra.mxu0 0.0
    %1523 = vmatprep.subr.mxu0 0.0
    %1524 = vmatpush2.msra.mxu0 0.0
    %1525 = vmatprep.subr.mxu0 0.0
    %1526 = vmatpush2.msra.mxu0 0.0
    %1527 = vmatprep.subr.mxu0 0.0
    %1528 = vmatpush2.msra.mxu0 0.0
    %1529 = vmatprep.subr.mxu0 0.0
    %1530 = vmatpush2.msra.mxu0 0.0
    %1531 = vmatprep.subr.mxu0 0.0
    %1532 = vmatpush2.msra.mxu0 0.0
    %1533 = vmatprep.mubr.f32.mxu0 0.0
    %1534 = vmatmul.mubr.f32.gmra.mxu0 %v1430
    %v1535 = vpop.f32.mrf.mxu0
    %v1536 = vadd.f32 %v1467, %v1535
    %v1537 = vpop.f32.mrf.mxu0
    %1538 = vmatprep.mubr.f32.mxu0 0.0
    %1539 = vmatmul.mubr.f32.gmra.mxu0 %v1431
    %v1540 = vpop.f32.mrf.mxu0
    %v1541 = vadd.f32 %v1467, %v1540
    %v1542 = vpop.f32.mrf.mxu0
    %1543 = vmatprep.mubr.f32.mxu0 0.0
    %1544 = vmatmul.mubr.f32.gmra.mxu0 %v1432
    %v1545 = vpop.f32.mrf.mxu0
    %v1546 = vadd.f32 %v1467, %v1545
    %v1547 = vpop.f32.mrf.mxu0
    %1548 = vmatprep.mubr.f32.mxu0 0.0
    %1549 = vmatmul.mubr.f32.gmra.mxu0 %v1433
    %v1550 = vpop.f32.mrf.mxu0
    %v1551 = vadd.f32 %v1467, %v1550
    %v1552 = vpop.f32.mrf.mxu0
    %1553 = vmatprep.mubr.f32.mxu0 0.0
    %1554 = vmatmul.mubr.f32.gmra.mxu0 %v1434
    %v1555 = vpop.f32.mrf.mxu0
    %v1556 = vadd.f32 %v1467, %v1555
    %v1557 = vpop.f32.mrf.mxu0
    %1558 = vmatprep.mubr.f32.mxu0 0.0
    %1559 = vmatmul.mubr.f32.gmra.mxu0 %v1435
    %v1560 = vpop.f32.mrf.mxu0
    %v1561 = vadd.f32 %v1467, %v1560
    %v1562 = vpop.f32.mrf.mxu0
    %1563 = vmatprep.mubr.f32.mxu0 0.0
    %1564 = vmatmul.mubr.f32.gmra.mxu0 %v1436
    %v1565 = vpop.f32.mrf.mxu0
    %v1566 = vadd.f32 %v1467, %v1565
    %v1567 = vpop.f32.mrf.mxu0
    %1568 = vmatprep.mubr.f32.mxu0 0.0
    %1569 = vmatmul.mubr.f32.gmra.mxu0 %v1437
    %v1570 = vpop.f32.mrf.mxu0
    %v1571 = vadd.f32 %v1467, %v1570
    %v1572 = vpop.f32.mrf.mxu0
    %1573 = vmatprep.mubr.f32.mxu0 0.0
    %1574 = vmatmul.mubr.f32.gmra.mxu0 %v1438
    %v1575 = vpop.f32.mrf.mxu0
    %v1576 = vadd.f32 %v1467, %v1575
    %v1577 = vpop.f32.mrf.mxu0
    %1578 = vmatprep.mubr.f32.mxu0 0.0
    %1579 = vmatmul.mubr.f32.gmra.mxu0 %v1439
    %v1580 = vpop.f32.mrf.mxu0
    %v1581 = vadd.f32 %v1467, %v1580
    %v1582 = vpop.f32.mrf.mxu0
    %1583 = vmatprep.mubr.f32.mxu0 0.0
    %1584 = vmatmul.mubr.f32.gmra.mxu0 %v1440
    %v1585 = vpop.f32.mrf.mxu0
    %v1586 = vadd.f32 %v1467, %v1585
    %v1587 = vpop.f32.mrf.mxu0
    %1588 = vmatprep.mubr.f32.mxu0 0.0
    %1589 = vmatmul.mubr.f32.gmra.mxu0 %v1441
    %v1590 = vpop.f32.mrf.mxu0
    %v1591 = vadd.f32 %v1467, %v1590
    %v1592 = vpop.f32.mrf.mxu0
    %1593 = vmatprep.mubr.f32.mxu0 0.0
    %1594 = vmatmul.mubr.f32.gmra.mxu0 %v1442
    %v1595 = vpop.f32.mrf.mxu0
    %v1596 = vadd.f32 %v1467, %v1595
    %v1597 = vpop.f32.mrf.mxu0
    %1598 = vmatprep.mubr.f32.mxu0 0.0
    %1599 = vmatmul.mubr.f32.gmra.mxu0 %v1443
    %v1600 = vpop.f32.mrf.mxu0
    %v1601 = vadd.f32 %v1467, %v1600
    %v1602 = vpop.f32.mrf.mxu0
    %1603 = vmatprep.mubr.f32.mxu0 0.0
    %1604 = vmatmul.mubr.f32.gmra.mxu0 %v1444
    %v1605 = vpop.f32.mrf.mxu0
    %v1606 = vadd.f32 %v1467, %v1605
    %v1607 = vpop.f32.mrf.mxu0
    %1608 = vmatprep.mubr.f32.mxu0 0.0
    %1609 = vmatmul.mubr.f32.gmra.mxu0 %v1445
    %v1610 = vpop.f32.mrf.mxu0
    %v1611 = vadd.f32 %v1467, %v1610
    %v1612 = vpop.f32.mrf.mxu0
    %1613 = vdwg.mxu0
    %v1614 = vmul.f32 %v116, 0.5
    %v1615 = vmul.f32 %v117, 0.5
    %v1616 = vmul.f32 %v118, 0.5
    %v1617 = vmul.f32 %v119, 0.5
    %v1618 = vmul.f32 %v120, 0.5
    %v1619 = vmul.f32 %v121, 0.5
    %v1620 = vmul.f32 %v122, 0.5
    %v1621 = vmul.f32 %v123, 0.5
    %v1622 = vmul.f32 %v124, 0.5
    %v1623 = vmul.f32 %v125, 0.5
    %v1624 = vmul.f32 %v126, 0.5
    %v1625 = vmul.f32 %v127, 0.5
    %v1626 = vmul.f32 %v128, 0.5
    %v1627 = vmul.f32 %v129, 0.5
    %v1628 = vmul.f32 %v130, 0.5
    %v1629 = vmul.f32 %v131, 0.5
    %v1630 = vmul.f32 %v1614, %v116
    %v1631 = vmul.f32 %v1615, %v117
    %v1632 = vmul.f32 %v1616, %v118
    %v1633 = vmul.f32 %v1617, %v119
    %v1634 = vmul.f32 %v1618, %v120
    %v1635 = vmul.f32 %v1619, %v121
    %v1636 = vmul.f32 %v1620, %v122
    %v1637 = vmul.f32 %v1621, %v123
    %v1638 = vmul.f32 %v1622, %v124
    %v1639 = vmul.f32 %v1623, %v125
    %v1640 = vmul.f32 %v1624, %v126
    %v1641 = vmul.f32 %v1625, %v127
    %v1642 = vmul.f32 %v1626, %v128
    %v1643 = vmul.f32 %v1627, %v129
    %v1644 = vmul.f32 %v1628, %v130
    %v1645 = vmul.f32 %v1629, %v131
    %v1646 = vadd.f32 %v1536, %v1630
    %v1647 = vadd.f32 %v1541, %v1631
    %v1648 = vadd.f32 %v1546, %v1632
    %v1649 = vadd.f32 %v1551, %v1633
    %v1650 = vadd.f32 %v1556, %v1634
    %v1651 = vadd.f32 %v1561, %v1635
    %v1652 = vadd.f32 %v1566, %v1636
    %v1653 = vadd.f32 %v1571, %v1637
    %v1654 = vadd.f32 %v1576, %v1638
    %v1655 = vadd.f32 %v1581, %v1639
    %v1656 = vadd.f32 %v1586, %v1640
    %v1657 = vadd.f32 %v1591, %v1641
    %v1658 = vadd.f32 %v1596, %v1642
    %v1659 = vadd.f32 %v1601, %v1643
    %v1660 = vadd.f32 %v1606, %v1644
    %v1661 = vadd.f32 %v1611, %v1645
    %v1662 = vld [vmem:[%s2] sm:$0xff]
    %v1663 = vld [vmem:[%s2 + $0x8] sm:$0xff]
    %v1664 = vld [vmem:[%s2 + $0x10] sm:$0xff]
    %v1665 = vld [vmem:[%s2 + $0x18] sm:$0xff]
    %v1666 = vld [vmem:[%s2 + $0x20] sm:$0xff]
    %v1667 = vld [vmem:[%s2 + $0x28] sm:$0xff]
    %v1668 = vld [vmem:[%s2 + $0x30] sm:$0xff]
    %v1669 = vld [vmem:[%s2 + $0x38] sm:$0xff]
    %v1670 = vld [vmem:[%s2 + $0x40] sm:$0xff]
    %v1671 = vld [vmem:[%s2 + $0x48] sm:$0xff]
    %v1672 = vld [vmem:[%s2 + $0x50] sm:$0xff]
    %v1673 = vld [vmem:[%s2 + $0x58] sm:$0xff]
    %v1674 = vld [vmem:[%s2 + $0x60] sm:$0xff]
    %v1675 = vld [vmem:[%s2 + $0x68] sm:$0xff]
    %v1676 = vld [vmem:[%s2 + $0x70] sm:$0xff]
    %v1677 = vld [vmem:[%s2 + $0x78] sm:$0xff]
    %v1678 = vsub.f32 1.0, %v1662
    %v1679 = vsub.f32 1.0, %v1663
    %v1680 = vsub.f32 1.0, %v1664
    %v1681 = vsub.f32 1.0, %v1665
    %v1682 = vsub.f32 1.0, %v1666
    %v1683 = vsub.f32 1.0, %v1667
    %v1684 = vsub.f32 1.0, %v1668
    %v1685 = vsub.f32 1.0, %v1669
    %v1686 = vsub.f32 1.0, %v1670
    %v1687 = vsub.f32 1.0, %v1671
    %v1688 = vsub.f32 1.0, %v1672
    %v1689 = vsub.f32 1.0, %v1673
    %v1690 = vsub.f32 1.0, %v1674
    %v1691 = vsub.f32 1.0, %v1675
    %v1692 = vsub.f32 1.0, %v1676
    %v1693 = vsub.f32 1.0, %v1677
    %1695 = vset.pattern.permute.xlu0 0
    %1696 = vperm.xlu0 %1695, %v1678
    %v1697 = vpop.permute.xlu0 %1696
    %1700 = vset.pattern.permute.xlu0 0
    %1701 = vperm.xlu0 %1700, %v1679
    %v1702 = vpop.permute.xlu0 %1701
    %1705 = vset.pattern.permute.xlu0 0
    %1706 = vperm.xlu0 %1705, %v1680
    %v1707 = vpop.permute.xlu0 %1706
    %1710 = vset.pattern.permute.xlu0 0
    %1711 = vperm.xlu0 %1710, %v1681
    %v1712 = vpop.permute.xlu0 %1711
    %1715 = vset.pattern.permute.xlu0 0
    %1716 = vperm.xlu0 %1715, %v1682
    %v1717 = vpop.permute.xlu0 %1716
    %1720 = vset.pattern.permute.xlu0 0
    %1721 = vperm.xlu0 %1720, %v1683
    %v1722 = vpop.permute.xlu0 %1721
    %1725 = vset.pattern.permute.xlu0 0
    %1726 = vperm.xlu0 %1725, %v1684
    %v1727 = vpop.permute.xlu0 %1726
    %1730 = vset.pattern.permute.xlu0 0
    %1731 = vperm.xlu0 %1730, %v1685
    %v1732 = vpop.permute.xlu0 %1731
    %1735 = vset.pattern.permute.xlu0 0
    %1736 = vperm.xlu0 %1735, %v1686
    %v1737 = vpop.permute.xlu0 %1736
    %1740 = vset.pattern.permute.xlu0 0
    %1741 = vperm.xlu0 %1740, %v1687
    %v1742 = vpop.permute.xlu0 %1741
    %1745 = vset.pattern.permute.xlu0 0
    %1746 = vperm.xlu0 %1745, %v1688
    %v1747 = vpop.permute.xlu0 %1746
    %1750 = vset.pattern.permute.xlu0 0
    %1751 = vperm.xlu0 %1750, %v1689
    %v1752 = vpop.permute.xlu0 %1751
    %1755 = vset.pattern.permute.xlu0 0
    %1756 = vperm.xlu0 %1755, %v1690
    %v1757 = vpop.permute.xlu0 %1756
    %1760 = vset.pattern.permute.xlu0 0
    %1761 = vperm.xlu0 %1760, %v1691
    %v1762 = vpop.permute.xlu0 %1761
    %1765 = vset.pattern.permute.xlu0 0
    %1766 = vperm.xlu0 %1765, %v1692
    %v1767 = vpop.permute.xlu0 %1766
    %1770 = vset.pattern.permute.xlu0 0
    %1771 = vperm.xlu0 %1770, %v1693
    %v1772 = vpop.permute.xlu0 %1771
    %v1774 = vmul.f32 %v1646, %v1697
    %v1775 = vmul.f32 %v1647, %v1702
    %v1776 = vmul.f32 %v1648, %v1707
    %v1777 = vmul.f32 %v1649, %v1712
    %v1778 = vmul.f32 %v1650, %v1717
    %v1779 = vmul.f32 %v1651, %v1722
    %v1780 = vmul.f32 %v1652, %v1727
    %v1781 = vmul.f32 %v1653, %v1732
    %v1782 = vmul.f32 %v1654, %v1737
    %v1783 = vmul.f32 %v1655, %v1742
    %v1784 = vmul.f32 %v1656, %v1747
    %v1785 = vmul.f32 %v1657, %v1752
    %v1786 = vmul.f32 %v1658, %v1757
    %v1787 = vmul.f32 %v1659, %v1762
    %v1788 = vmul.f32 %v1660, %v1767
    %v1789 = vmul.f32 %v1661, %v1772
    %1790 = vst.msk [vmem:[%s16] sm:$0xff] %vm140, %v1774
    %1791 = vst.msk [vmem:[%s16 + $0x8] sm:$0xff] %vm140, %v1775
    %1792 = vst.msk [vmem:[%s16 + $0x10] sm:$0xff] %vm140, %v1776
    %1793 = vst.msk [vmem:[%s16 + $0x18] sm:$0xff] %vm140, %v1777
    %1794 = vst.msk [vmem:[%s16 + $0x20] sm:$0xff] %vm140, %v1778
    %1795 = vst.msk [vmem:[%s16 + $0x28] sm:$0xff] %vm140, %v1779
    %1796 = vst.msk [vmem:[%s16 + $0x30] sm:$0xff] %vm140, %v1780
    %1797 = vst.msk [vmem:[%s16 + $0x38] sm:$0xff] %vm140, %v1781
    %1798 = vst.msk [vmem:[%s16 + $0x40] sm:$0xff] %vm140, %v1782
    %1799 = vst.msk [vmem:[%s16 + $0x48] sm:$0xff] %vm140, %v1783
    %1800 = vst.msk [vmem:[%s16 + $0x50] sm:$0xff] %vm140, %v1784
    %1801 = vst.msk [vmem:[%s16 + $0x58] sm:$0xff] %vm140, %v1785
    %1802 = vst.msk [vmem:[%s16 + $0x60] sm:$0xff] %vm140, %v1786
    %1803 = vst.msk [vmem:[%s16 + $0x68] sm:$0xff] %vm140, %v1787
    %1804 = vst.msk [vmem:[%s16 + $0x70] sm:$0xff] %vm140, %v1788
    %1805 = vst.msk [vmem:[%s16 + $0x78] sm:$0xff] %vm140, %v1789
    // Predicated region
    $region82: #{adversary_forward.1} parent=1 // pred_check
      _
    $region83: #{adversary_forward.1} parent=1 // pred_check_branch
      %1807 = sbr.rel (0) target = $region85
    $region84: #{adversary_forward.1} parent=1 // pred_region
      _
    $region85: #{adversary_forward.1} parent=1 // pred_fallthru
      _
    // Predicated region
    $region86: #{adversary_forward.1} parent=1 // pred_check
      _
    $region87: #{adversary_forward.1} parent=1 // pred_check_branch
      %1809 = sbr.rel (0) target = $region89
    $region88: #{adversary_forward.1} parent=1 // pred_region
      _
    $region89: #{adversary_forward.1} parent=1 // pred_fallthru
      _
    %1810 = vsyncpa [#allocation3], 1
    %1811 = vsyncpa [#allocation5], 1
    %1812 = vsyncpa [#allocation8], 1

</llo_original>
